<compile_context>
chip_gen: v7x
topology: tpu7x:2x2x1
jax: 0.10.0
libtpu: 0.0.40
codegen_flags: <defaults>
</compile_context>

<pallas_src>
import functools

import jax
import jax.numpy as jnp
from jax.experimental import pallas as pl
from jax.experimental.pallas import tpu as pltpu


# ---------------------------------------------------------------------------
# In-kernel helpers
# ---------------------------------------------------------------------------
def _shift_w(a, dj):
    """Column shift: result[..., w, :] == a[..., w + dj, :] for w < W - dj.

    The last dj columns wrap around (garbage) and are cropped before the
    store.  Written as an explicit slice + concat so the shift direction is
    unambiguous; Mosaic lowers it to a sublane rotate/copy (off the VPU).
    """
    if dj == 0:
        return a
    return jnp.concatenate([a[:, :, dj:, :], a[:, :, :dj, :]], axis=2)


def _for_each_strip(process_strip, n_strips, strip):
    """Run process_strip(h0) for every output H-strip."""
    if n_strips <= 8:
        # Short, static trip count: fully unrolled so the scheduler sees it.
        for s in range(n_strips):
            process_strip(s * strip)
    else:
        def body(s, carry):
            process_strip(pl.multiple_of(s * strip, strip))
            return carry
        jax.lax.fori_loop(0, n_strips, body, None, unroll=False)


# ---------------------------------------------------------------------------
# Kernels
# ---------------------------------------------------------------------------
def _local_agg1_two_stage_kernel(x_ref, w0_ref, dw_ref, w1_ref, bias_ref, o_ref,
                                 *, strip):
    """General-C path: matmul0 -> 9-tap VPU depthwise -> matmul1, per H-strip."""
    bt, H, W, C = x_ref.shape
    Ho, Wo = H - 2, W - 2
    n_strips = Ho // strip

    w0 = w0_ref[...]          # (C, C)  bf16, BN0 folded in
    w1 = w1_ref[...]          # (C, C)  bf16, BN1 folded in
    dw = dw_ref[...]          # (3, 3, C)  bf16 (v6e/v7x) or f32 (v5e)
    bias = bias_ref[...]      # (1, C)  f32, all BN biases collapsed

    def process_strip(h0):
        # ---- pointwise conv 0 on the (strip+2)-row input window (MXU) ----
        xw = x_ref[:, pl.ds(h0, strip + 2), :, :]
        x2 = xw.reshape(bt * (strip + 2) * W, C).astype(jnp.bfloat16)
        y = jnp.dot(x2, w0, preferred_element_type=jnp.float32)
        y = y.astype(dw.dtype).reshape(bt, strip + 2, W, C)

        # ---- 3x3 depthwise: 9 taps, strip-resident f32 accumulator ----
        acc = None
        for dj in range(3):
            ys = _shift_w(y, dj)                      # columns shifted by dj
            for di in range(3):
                t = ys[:, di:di + strip, :, :] * dw[di, dj]
                acc = t.astype(jnp.float32) if acc is None else acc + t

        # ---- pointwise conv 1 (MXU) + single collapsed bias ----
        z = acc.reshape(bt * strip * W, C).astype(jnp.bfloat16)
        out = jnp.dot(z, w1, preferred_element_type=jnp.float32) + bias
        out = out.reshape(bt, strip, W, C)[:, :, :Wo, :]   # crop invalid cols
        o_ref[:, pl.ds(h0, strip), :, :] = out.astype(o_ref.dtype)

    _for_each_strip(process_strip, n_strips, strip)


def _local_agg1_fused_taps_kernel(x_ref, m9_ref, bias_ref, o_ref, *, strip):
    """Tiny-C path: the whole block as 9 MXU taps, x_shift @ (w0' dw_tap w1')."""
    bt, H, W, C = x_ref.shape
    Ho, Wo = H - 2, W - 2
    n_strips = Ho // strip

    bias = bias_ref[...]      # (1, C) f32

    def process_strip(h0):
        xw = x_ref[:, pl.ds(h0, strip + 2), :, :].astype(jnp.bfloat16)
        acc = None
        for dj in range(3):
            xs = _shift_w(xw, dj)
            for di in range(3):
                lhs = xs[:, di:di + strip, :, :].reshape(bt * strip * W, C)
                t = jnp.dot(lhs, m9_ref[di, dj],
                            preferred_element_type=jnp.float32)
                acc = t if acc is None else acc + t
        out = acc + bias
        out = out.reshape(bt, strip, W, C)[:, :, :Wo, :]
        o_ref[:, pl.ds(h0, strip), :, :] = out.astype(o_ref.dtype)

    _for_each_strip(process_strip, n_strips, strip)


# ---------------------------------------------------------------------------
# Wrapper / glue
# ---------------------------------------------------------------------------
def _chip_kind():
    try:
        return jax.devices()[0].device_kind.lower()
    except Exception:
        return ""


def _vmem_budget(kind):
    """(input-tile byte target, vmem_limit_bytes, min grid steps) per chip."""
    if "v5" in kind:                    # 16 MiB default scoped VMEM, 1 vst slot
        return 1 << 20, 64 << 20, 2
    if "v7" in kind:                    # 64 MiB physical VMEM, 2 TensorCores
        return 2 << 20, 48 << 20, 4
    return 4 << 20, 64 << 20, 2         # v6e / default


def _pick_bt(B, H, Wp, C, itemsize, target_bytes, min_steps):
    """Batch samples per grid step: big tiles, but keep >= min_steps steps."""
    per_sample = H * Wp * C * itemsize
    bt = int(max(1, min(B, target_bytes // max(per_sample, 1))))
    bt = min(bt, max(1, B // min_steps))
    while B % bt:
        bt -= 1
    return bt


def _pick_strip(Ho, max_strip=16):
    """Largest divisor of Ho that is <= max_strip (H rows per strip)."""
    best = 1
    for s in range(2, min(Ho, max_strip) + 1):
        if Ho % s == 0:
            best = s
    return best


def _local_agg1_nhwc(x_nhwc, kp, *, bt=None, strip=None, use_fused_taps=None):
    """x_nhwc: (B, H, W, C). kp: folded params. Returns (B, H-2, W-2, C)."""
    B, H, W, C = x_nhwc.shape
    assert H > 2 and W > 2, "valid 3x3 conv needs H, W > 2"
    Ho, Wo = H - 2, W - 2

    kind = _chip_kind()
    target_bytes, vmem_limit, min_steps = _vmem_budget(kind)

    # Pad W (sublane dim) to a multiple of 8 so in-kernel reshapes stay free.
    Wp = -(-W // 8) * 8
    if Wp != W:
        x_nhwc = jnp.pad(x_nhwc, ((0, 0), (0, 0), (0, Wp - W), (0, 0)))
    Wo_p = Wp - 2

    if bt is None:
        bt = _pick_bt(B, H, Wp, C, x_nhwc.dtype.itemsize, target_bytes, min_steps)
    if strip is None:
        strip = _pick_strip(Ho)
    if use_fused_taps is None:
        use_fused_taps = C <= 32      # tiny C: 9 MXU taps beat 2 matmuls + VPU dw

    # bf16 depthwise taps on chips with a bf16 VPU; f32 on v5e.
    tap_dtype = jnp.float32 if "v5" in kind else jnp.bfloat16

    x_spec = pl.BlockSpec((bt, H, Wp, C), lambda b: (b, 0, 0, 0))
    out_spec = pl.BlockSpec((bt, Ho, Wo_p, C), lambda b: (b, 0, 0, 0))
    out_shape = jax.ShapeDtypeStruct((B, Ho, Wo_p, C), x_nhwc.dtype)

    if use_fused_taps:
        kern = functools.partial(_local_agg1_fused_taps_kernel, strip=strip)
        in_specs = [
            x_spec,
            pl.BlockSpec((3, 3, C, C), lambda b: (0, 0, 0, 0)),   # fused taps
            pl.BlockSpec((1, C), lambda b: (0, 0)),               # fused bias
        ]
        args = (x_nhwc, kp["m9"], kp["bias"])
    else:
        kern = functools.partial(_local_agg1_two_stage_kernel, strip=strip)
        in_specs = [
            x_spec,
            pl.BlockSpec((C, C), lambda b: (0, 0)),               # w0' bf16
            pl.BlockSpec((3, 3, C), lambda b: (0, 0, 0)),         # depthwise
            pl.BlockSpec((C, C), lambda b: (0, 0)),               # w1' bf16
            pl.BlockSpec((1, C), lambda b: (0, 0)),               # fused bias
        ]
        args = (x_nhwc, kp["w0"], kp["dw"].astype(tap_dtype), kp["w1"], kp["bias"])

    out = pl.pallas_call(
        kern,
        out_shape=out_shape,
        grid_spec=pltpu.PrefetchScalarGridSpec(
            num_scalar_prefetch=0,
            grid=(B // bt,),
            in_specs=in_specs,
            out_specs=out_spec),
        compiler_params=pltpu.CompilerParams(
            dimension_semantics=("parallel",),
            vmem_limit_bytes=vmem_limit),
    )(*args)

    if Wo_p != Wo:                       # drop columns produced by the W padding
        out = out[:, :, :Wo, :]
    return out


def fold_params(p):
    """Fold BN0/BN1 into the 1x1 weights; collapse all biases into one vector.

    Also pre-computes the 9 fully-fused per-tap matrices used for tiny C.
    """
    w0e = p["s0"][:, None] * p["w0"]                    # (Cin, Cout)
    w1e = p["s1"][:, None] * p["w1"]                    # (Cin, Cout)
    c0 = p["b0"] @ p["w0"]                              # constant after conv0
    dsum = p["dw"].sum(axis=(0, 1))                     # (C,)
    bias = (dsum * c0 * p["s1"] + p["b1"]) @ p["w1"]    # (C,)
    # x_shift @ (w0e @ diag(dw_tap) @ w1e)  for each of the 9 taps
    m9 = jnp.einsum("ic,xyc,co->xyio", w0e, p["dw"], w1e)   # (3, 3, C, C)
    return {
        "w0": w0e.astype(jnp.bfloat16),
        "dw": p["dw"].astype(jnp.float32),
        "w1": w1e.astype(jnp.bfloat16),
        "m9": m9.astype(jnp.bfloat16),
        "bias": bias.astype(jnp.float32).reshape(1, -1),
    }


def local_agg1_nhwc(x_nhwc, raw_params, **kw):
    """NHWC entry point (preferred: avoids the NCHW<->NHWC HBM round trips)."""
    return _local_agg1_nhwc(x_nhwc, fold_params(raw_params), **kw)


def local_agg1(x_nchw, raw_params, **kw):
    """PyTorch-style interface: (B, C, H, W) in, (B, C, H-2, W-2) out."""
    x_nhwc = jnp.transpose(x_nchw, (0, 2, 3, 1))
    y = _local_agg1_nhwc(x_nhwc, fold_params(raw_params), **kw)
    return jnp.transpose(y, (0, 3, 1, 2))


# ---------------------------------------------------------------------------
# Synthetic parameters + pure-JAX reference
# ---------------------------------------------------------------------------
def _fold_bn(gamma, beta, mean, var, eps=1e-5):
    scale = gamma / jnp.sqrt(var + eps)
    bias = beta - mean * scale
    return scale, bias


def make_params(key, C):
    """Deterministic synthetic parameters matching LocalAgg1(channels=C)."""
    ks = jax.random.split(key, 10)
    g0 = 1.0 + 0.1 * jax.random.normal(ks[0], (C,), jnp.float32)
    be0 = 0.1 * jax.random.normal(ks[1], (C,), jnp.float32)
    m0 = 0.1 * jax.random.normal(ks[2], (C,), jnp.float32)
    v0 = 1.0 + 0.1 * jax.random.uniform(ks[3], (C,), jnp.float32)
    w0_pt = 0.1 * jax.random.normal(ks[4], (C, C), jnp.float32)          # (Cout, Cin)
    dw_pt = 0.1 * jax.random.normal(ks[5], (C, 1, 3, 3), jnp.float32)    # (C, 1, 3, 3)
    g1 = 1.0 + 0.1 * jax.random.normal(ks[6], (C,), jnp.float32)
    be1 = 0.1 * jax.random.normal(ks[7], (C,), jnp.float32)
    m1 = 0.1 * jax.random.normal(ks[8], (C,), jnp.float32)
    v1 = 1.0 + 0.1 * jax.random.uniform(ks[9], (C,), jnp.float32)
    w1_pt = 0.1 * jax.random.normal(jax.random.fold_in(key, 99), (C, C), jnp.float32)

    s0, b0 = _fold_bn(g0, be0, m0, v0)
    s1, b1 = _fold_bn(g1, be1, m1, v1)
    return {
        "s0": s0, "b0": b0,
        "w0": jnp.transpose(w0_pt),                         # (Cin, Cout)
        "dw": jnp.transpose(dw_pt[:, 0, :, :], (1, 2, 0)),  # (3, 3, C)
        "s1": s1, "b1": b1,
        "w1": jnp.transpose(w1_pt),                         # (Cin, Cout)
    }


def reference_nhwc(x, p):
    """Pure-JAX f32 reference (NHWC), straight BN->conv->dw->BN->conv order."""
    B, H, W, C = x.shape
    Ho, Wo = H - 2, W - 2
    y = x * p["s0"] + p["b0"]
    y = jnp.einsum("bhwi,io->bhwo", y, p["w0"])
    acc = jnp.zeros((B, Ho, Wo, C), jnp.float32)
    for di in range(3):
        for dj in range(3):
            acc = acc + y[:, di:di + Ho, dj:dj + Wo, :] * p["dw"][di, dj, :]
    acc = acc * p["s1"] + p["b1"]
    return jnp.einsum("bhwi,io->bhwo", acc, p["w1"])


if __name__ == "__main__":
    configs = [
        (2, 16, 16, 16),   # tiny C        -> fused 9-tap MXU path
        (4, 64, 34, 16),   # C = 64        -> two-stage path, 2 H-strips
        (2, 32, 14, 14),   # W % 8 != 0    -> wrapper pads W, fused path
    ]
    for idx, (B, C, H, W) in enumerate(configs):
        key = jax.random.fold_in(jax.random.PRNGKey(0), idx)
        kx, kp = jax.random.split(key)
        x_nchw = jax.random.normal(kx, (B, C, H, W), jnp.float32)
        raw = make_params(kp, C)

        out_nchw = jax.block_until_ready(local_agg1(x_nchw, raw))

        x_nhwc = jnp.transpose(x_nchw, (0, 2, 3, 1))
        ref_nchw = jnp.transpose(reference_nhwc(x_nhwc, raw), (0, 3, 1, 2))

        assert out_nchw.shape == (B, C, H - 2, W - 2), out_nchw.shape
        max_err = float(jnp.max(jnp.abs(out_nchw - ref_nchw)))
        # bf16 weights/activations inside the kernel -> bf16-level tolerance.
        assert jnp.allclose(out_nchw, ref_nchw, atol=5e-2, rtol=5e-2), (
            f"config {idx} {(B, C, H, W)}: mismatch vs JAX reference "
            f"(max abs err {max_err})")

    print("KERNEL_OK")
</pallas_src>

<mosaic_0001>
module attributes {stable_mosaic.version = 11 : i64} {
  func.func @_local_agg1_fused_taps_kernel(%arg0: i32, %arg1: memref<1x16x16x16xf32, #tpu.memory_space<vmem>>, %arg2: memref<3x3x16x16xbf16, #tpu.memory_space<vmem>>, %arg3: memref<1x16xf32, #tpu.memory_space<vmem>>, %arg4: memref<1x14x14x16xf32, #tpu.memory_space<vmem>>) attributes {dimension_semantics = [#tpu.dimension_semantics<parallel>], iteration_bounds = array<i64: 2>, scalar_prefetch = 0 : i64, scratch_operands = 0 : i64, tpu.core_type = #tpu.core_type<tc>, window_params = [{transform_indices = @transform_0, window_bounds = array<i64: 1, 16, 16, 16>}, {pipeline_mode = #tpu.pipeline_mode<synchronous>, transform_indices = @transform_1, window_bounds = array<i64: 3, 3, 16, 16>}, {pipeline_mode = #tpu.pipeline_mode<synchronous>, transform_indices = @transform_2, window_bounds = array<i64: 1, 16>}, {transform_indices = @transform_3, window_bounds = array<i64: 1, 14, 14, 16>}]} {
    %c0 = arith.constant 0 : index
    %c0_0 = arith.constant 0 : index
    %0 = vector.load %arg3[%c0, %c0_0] : memref<1x16xf32, #tpu.memory_space<vmem>>, vector<1x16xf32>
    %c0_1 = arith.constant 0 : index
    %c0_2 = arith.constant 0 : index
    %c0_3 = arith.constant 0 : index
    %c0_4 = arith.constant 0 : index
    %1 = vector.load %arg1[%c0_1, %c0_2, %c0_3, %c0_4] : memref<1x16x16x16xf32, #tpu.memory_space<vmem>>, vector<1x16x16x16xf32>
    %2 = arith.truncf %1 : vector<1x16x16x16xf32> to vector<1x16x16x16xbf16>
    %3 = vector.extract_strided_slice %2 {offsets = [0, 0, 0, 0], sizes = [1, 14, 16, 16], strides = [1, 1, 1, 1]} : vector<1x16x16x16xbf16> to vector<1x14x16x16xbf16>
    %4 = vector.shape_cast %3 : vector<1x14x16x16xbf16> to vector<224x16xbf16>
    %c0_5 = arith.constant 0 : index
    %c0_6 = arith.constant 0 : index
    %c0_7 = arith.constant 0 : index
    %c0_8 = arith.constant 0 : index
    %5 = vector.load %arg2[%c0_5, %c0_6, %c0_7, %c0_8] : memref<3x3x16x16xbf16, #tpu.memory_space<vmem>>, vector<1x1x16x16xbf16>
    %6 = vector.shape_cast %5 : vector<1x1x16x16xbf16> to vector<16x16xbf16>
    %cst = arith.constant dense<0.000000e+00> : vector<224x16xf32>
    %7 = tpu.matmul %4, %6, %cst {dimension_numbers = #tpu.dot_dimension_numbers<[1], [0], [0], [1], [0, 0, 1, 1], [], []>} : vector<224x16xbf16>, vector<16x16xbf16>, vector<224x16xf32> -> vector<224x16xf32>
    %8 = vector.extract_strided_slice %2 {offsets = [0, 1, 0, 0], sizes = [1, 14, 16, 16], strides = [1, 1, 1, 1]} : vector<1x16x16x16xbf16> to vector<1x14x16x16xbf16>
    %9 = vector.shape_cast %8 : vector<1x14x16x16xbf16> to vector<224x16xbf16>
    %c1 = arith.constant 1 : index
    %c0_9 = arith.constant 0 : index
    %c0_10 = arith.constant 0 : index
    %c0_11 = arith.constant 0 : index
    %10 = vector.load %arg2[%c1, %c0_9, %c0_10, %c0_11] : memref<3x3x16x16xbf16, #tpu.memory_space<vmem>>, vector<1x1x16x16xbf16>
    %11 = vector.shape_cast %10 : vector<1x1x16x16xbf16> to vector<16x16xbf16>
    %cst_12 = arith.constant dense<0.000000e+00> : vector<224x16xf32>
    %12 = tpu.matmul %9, %11, %cst_12 {dimension_numbers = #tpu.dot_dimension_numbers<[1], [0], [0], [1], [0, 0, 1, 1], [], []>} : vector<224x16xbf16>, vector<16x16xbf16>, vector<224x16xf32> -> vector<224x16xf32>
    %13 = arith.addf %7, %12 : vector<224x16xf32>
    %14 = vector.extract_strided_slice %2 {offsets = [0, 2, 0, 0], sizes = [1, 14, 16, 16], strides = [1, 1, 1, 1]} : vector<1x16x16x16xbf16> to vector<1x14x16x16xbf16>
    %15 = vector.shape_cast %14 : vector<1x14x16x16xbf16> to vector<224x16xbf16>
    %c2 = arith.constant 2 : index
    %c0_13 = arith.constant 0 : index
    %c0_14 = arith.constant 0 : index
    %c0_15 = arith.constant 0 : index
    %16 = vector.load %arg2[%c2, %c0_13, %c0_14, %c0_15] : memref<3x3x16x16xbf16, #tpu.memory_space<vmem>>, vector<1x1x16x16xbf16>
    %17 = vector.shape_cast %16 : vector<1x1x16x16xbf16> to vector<16x16xbf16>
    %cst_16 = arith.constant dense<0.000000e+00> : vector<224x16xf32>
    %18 = tpu.matmul %15, %17, %cst_16 {dimension_numbers = #tpu.dot_dimension_numbers<[1], [0], [0], [1], [0, 0, 1, 1], [], []>} : vector<224x16xbf16>, vector<16x16xbf16>, vector<224x16xf32> -> vector<224x16xf32>
    %19 = arith.addf %13, %18 : vector<224x16xf32>
    %20 = vector.extract_strided_slice %2 {offsets = [0, 0, 1, 0], sizes = [1, 16, 15, 16], strides = [1, 1, 1, 1]} : vector<1x16x16x16xbf16> to vector<1x16x15x16xbf16>
    %21 = vector.extract_strided_slice %2 {offsets = [0, 0, 0, 0], sizes = [1, 16, 1, 16], strides = [1, 1, 1, 1]} : vector<1x16x16x16xbf16> to vector<1x16x1x16xbf16>
    %22 = tpu.concatenate %20, %21 in 2 : vector<1x16x15x16xbf16>, vector<1x16x1x16xbf16> -> vector<1x16x16x16xbf16>
    %23 = vector.extract_strided_slice %22 {offsets = [0, 0, 0, 0], sizes = [1, 14, 16, 16], strides = [1, 1, 1, 1]} : vector<1x16x16x16xbf16> to vector<1x14x16x16xbf16>
    %24 = vector.shape_cast %23 : vector<1x14x16x16xbf16> to vector<224x16xbf16>
    %c0_17 = arith.constant 0 : index
    %c1_18 = arith.constant 1 : index
    %c0_19 = arith.constant 0 : index
    %c0_20 = arith.constant 0 : index
    %25 = vector.load %arg2[%c0_17, %c1_18, %c0_19, %c0_20] : memref<3x3x16x16xbf16, #tpu.memory_space<vmem>>, vector<1x1x16x16xbf16>
    %26 = vector.shape_cast %25 : vector<1x1x16x16xbf16> to vector<16x16xbf16>
    %cst_21 = arith.constant dense<0.000000e+00> : vector<224x16xf32>
    %27 = tpu.matmul %24, %26, %cst_21 {dimension_numbers = #tpu.dot_dimension_numbers<[1], [0], [0], [1], [0, 0, 1, 1], [], []>} : vector<224x16xbf16>, vector<16x16xbf16>, vector<224x16xf32> -> vector<224x16xf32>
    %28 = arith.addf %19, %27 : vector<224x16xf32>
    %29 = vector.extract_strided_slice %22 {offsets = [0, 1, 0, 0], sizes = [1, 14, 16, 16], strides = [1, 1, 1, 1]} : vector<1x16x16x16xbf16> to vector<1x14x16x16xbf16>
    %30 = vector.shape_cast %29 : vector<1x14x16x16xbf16> to vector<224x16xbf16>
    %c1_22 = arith.constant 1 : index
    %c1_23 = arith.constant 1 : index
    %c0_24 = arith.constant 0 : index
    %c0_25 = arith.constant 0 : index
    %31 = vector.load %arg2[%c1_22, %c1_23, %c0_24, %c0_25] : memref<3x3x16x16xbf16, #tpu.memory_space<vmem>>, vector<1x1x16x16xbf16>
    %32 = vector.shape_cast %31 : vector<1x1x16x16xbf16> to vector<16x16xbf16>
    %cst_26 = arith.constant dense<0.000000e+00> : vector<224x16xf32>
    %33 = tpu.matmul %30, %32, %cst_26 {dimension_numbers = #tpu.dot_dimension_numbers<[1], [0], [0], [1], [0, 0, 1, 1], [], []>} : vector<224x16xbf16>, vector<16x16xbf16>, vector<224x16xf32> -> vector<224x16xf32>
    %34 = arith.addf %28, %33 : vector<224x16xf32>
    %35 = vector.extract_strided_slice %22 {offsets = [0, 2, 0, 0], sizes = [1, 14, 16, 16], strides = [1, 1, 1, 1]} : vector<1x16x16x16xbf16> to vector<1x14x16x16xbf16>
    %36 = vector.shape_cast %35 : vector<1x14x16x16xbf16> to vector<224x16xbf16>
    %c2_27 = arith.constant 2 : index
    %c1_28 = arith.constant 1 : index
    %c0_29 = arith.constant 0 : index
    %c0_30 = arith.constant 0 : index
    %37 = vector.load %arg2[%c2_27, %c1_28, %c0_29, %c0_30] : memref<3x3x16x16xbf16, #tpu.memory_space<vmem>>, vector<1x1x16x16xbf16>
    %38 = vector.shape_cast %37 : vector<1x1x16x16xbf16> to vector<16x16xbf16>
    %cst_31 = arith.constant dense<0.000000e+00> : vector<224x16xf32>
    %39 = tpu.matmul %36, %38, %cst_31 {dimension_numbers = #tpu.dot_dimension_numbers<[1], [0], [0], [1], [0, 0, 1, 1], [], []>} : vector<224x16xbf16>, vector<16x16xbf16>, vector<224x16xf32> -> vector<224x16xf32>
    %40 = arith.addf %34, %39 : vector<224x16xf32>
    %41 = vector.extract_strided_slice %2 {offsets = [0, 0, 2, 0], sizes = [1, 16, 14, 16], strides = [1, 1, 1, 1]} : vector<1x16x16x16xbf16> to vector<1x16x14x16xbf16>
    %42 = vector.extract_strided_slice %2 {offsets = [0, 0, 0, 0], sizes = [1, 16, 2, 16], strides = [1, 1, 1, 1]} : vector<1x16x16x16xbf16> to vector<1x16x2x16xbf16>
    %43 = tpu.concatenate %41, %42 in 2 : vector<1x16x14x16xbf16>, vector<1x16x2x16xbf16> -> vector<1x16x16x16xbf16>
    %44 = vector.extract_strided_slice %43 {offsets = [0, 0, 0, 0], sizes = [1, 14, 16, 16], strides = [1, 1, 1, 1]} : vector<1x16x16x16xbf16> to vector<1x14x16x16xbf16>
    %45 = vector.shape_cast %44 : vector<1x14x16x16xbf16> to vector<224x16xbf16>
    %c0_32 = arith.constant 0 : index
    %c2_33 = arith.constant 2 : index
    %c0_34 = arith.constant 0 : index
    %c0_35 = arith.constant 0 : index
    %46 = vector.load %arg2[%c0_32, %c2_33, %c0_34, %c0_35] : memref<3x3x16x16xbf16, #tpu.memory_space<vmem>>, vector<1x1x16x16xbf16>
    %47 = vector.shape_cast %46 : vector<1x1x16x16xbf16> to vector<16x16xbf16>
    %cst_36 = arith.constant dense<0.000000e+00> : vector<224x16xf32>
    %48 = tpu.matmul %45, %47, %cst_36 {dimension_numbers = #tpu.dot_dimension_numbers<[1], [0], [0], [1], [0, 0, 1, 1], [], []>} : vector<224x16xbf16>, vector<16x16xbf16>, vector<224x16xf32> -> vector<224x16xf32>
    %49 = arith.addf %40, %48 : vector<224x16xf32>
    %50 = vector.extract_strided_slice %43 {offsets = [0, 1, 0, 0], sizes = [1, 14, 16, 16], strides = [1, 1, 1, 1]} : vector<1x16x16x16xbf16> to vector<1x14x16x16xbf16>
    %51 = vector.shape_cast %50 : vector<1x14x16x16xbf16> to vector<224x16xbf16>
    %c1_37 = arith.constant 1 : index
    %c2_38 = arith.constant 2 : index
    %c0_39 = arith.constant 0 : index
    %c0_40 = arith.constant 0 : index
    %52 = vector.load %arg2[%c1_37, %c2_38, %c0_39, %c0_40] : memref<3x3x16x16xbf16, #tpu.memory_space<vmem>>, vector<1x1x16x16xbf16>
    %53 = vector.shape_cast %52 : vector<1x1x16x16xbf16> to vector<16x16xbf16>
    %cst_41 = arith.constant dense<0.000000e+00> : vector<224x16xf32>
    %54 = tpu.matmul %51, %53, %cst_41 {dimension_numbers = #tpu.dot_dimension_numbers<[1], [0], [0], [1], [0, 0, 1, 1], [], []>} : vector<224x16xbf16>, vector<16x16xbf16>, vector<224x16xf32> -> vector<224x16xf32>
    %55 = arith.addf %49, %54 : vector<224x16xf32>
    %56 = vector.extract_strided_slice %43 {offsets = [0, 2, 0, 0], sizes = [1, 14, 16, 16], strides = [1, 1, 1, 1]} : vector<1x16x16x16xbf16> to vector<1x14x16x16xbf16>
    %57 = vector.shape_cast %56 : vector<1x14x16x16xbf16> to vector<224x16xbf16>
    %c2_42 = arith.constant 2 : index
    %c2_43 = arith.constant 2 : index
    %c0_44 = arith.constant 0 : index
    %c0_45 = arith.constant 0 : index
    %58 = vector.load %arg2[%c2_42, %c2_43, %c0_44, %c0_45] : memref<3x3x16x16xbf16, #tpu.memory_space<vmem>>, vector<1x1x16x16xbf16>
    %59 = vector.shape_cast %58 : vector<1x1x16x16xbf16> to vector<16x16xbf16>
    %cst_46 = arith.constant dense<0.000000e+00> : vector<224x16xf32>
    %60 = tpu.matmul %57, %59, %cst_46 {dimension_numbers = #tpu.dot_dimension_numbers<[1], [0], [0], [1], [0, 0, 1, 1], [], []>} : vector<224x16xbf16>, vector<16x16xbf16>, vector<224x16xf32> -> vector<224x16xf32>
    %61 = arith.addf %55, %60 : vector<224x16xf32>
    %62 = vector.broadcast %0 : vector<1x16xf32> to vector<224x16xf32>
    %63 = arith.addf %61, %62 : vector<224x16xf32>
    %64 = vector.shape_cast %63 : vector<224x16xf32> to vector<1x14x16x16xf32>
    %65 = vector.extract_strided_slice %64 {offsets = [0, 0, 0, 0], sizes = [1, 14, 14, 16], strides = [1, 1, 1, 1]} : vector<1x14x16x16xf32> to vector<1x14x14x16xf32>
    %c0_47 = arith.constant 0 : index
    %c0_48 = arith.constant 0 : index
    %c0_49 = arith.constant 0 : index
    %c0_50 = arith.constant 0 : index
    %66 = vector.load %arg4[%c0_47, %c0_48, %c0_49, %c0_50] : memref<1x14x14x16xf32, #tpu.memory_space<vmem>>, vector<1x14x14x16xf32>
    tpu.vector_store %arg4[%c0_47, %c0_48, %c0_49, %c0_50], %65 {strides = array<i32>} : memref<1x14x14x16xf32, #tpu.memory_space<vmem>>, vector<1x14x14x16xf32>,
    return
  }
  func.func @transform_0(%arg0: i32) -> (i32, i32, i32, i32) {
    %c0_i32 = arith.constant 0 : i32
    %c0_i32_0 = arith.constant 0 : i32
    %c0_i32_1 = arith.constant 0 : i32
    %c0_i32_2 = arith.constant 0 : i32
    return %arg0, %c0_i32, %c0_i32_0, %c0_i32_1 : i32, i32, i32, i32
  }
  func.func @transform_1(%arg0: i32) -> (i32, i32, i32, i32) {
    %c0_i32 = arith.constant 0 : i32
    %c0_i32_0 = arith.constant 0 : i32
    %c0_i32_1 = arith.constant 0 : i32
    %c0_i32_2 = arith.constant 0 : i32
    %c0_i32_3 = arith.constant 0 : i32
    return %c0_i32, %c0_i32_0, %c0_i32_1, %c0_i32_2 : i32, i32, i32, i32
  }
  func.func @transform_2(%arg0: i32) -> (i32, i32) {
    %c0_i32 = arith.constant 0 : i32
    %c0_i32_0 = arith.constant 0 : i32
    %c0_i32_1 = arith.constant 0 : i32
    return %c0_i32, %c0_i32_0 : i32, i32
  }
  func.func @transform_3(%arg0: i32) -> (i32, i32, i32, i32) {
    %c0_i32 = arith.constant 0 : i32
    %c0_i32_0 = arith.constant 0 : i32
    %c0_i32_1 = arith.constant 0 : i32
    %c0_i32_2 = arith.constant 0 : i32
    return %arg0, %c0_i32, %c0_i32_0, %c0_i32_1 : i32, i32, i32, i32
  }
}

</mosaic_0001>

<llo_original>
// kernel: tpu_custom_call.1
$region0: #{tpu_custom_call.1}
  #allocation0 [shape = 'u32[]', space=smem, size = 0x4, offset = 0x4, fixed_abs, tag = 'smem constant byte address 0x4 - core index']
  #allocation1 [shape = 'u32[144,128]{1,0:T(1,128)}', space=vmem, size = 0x12000, scoped, tag = 'internal scratch']
  %s0 = inlined_call_operand.hbm [shape: f32[2,16,16,16], index: 0, kind: input, shape index: {}]
  %s1 = inlined_call_operand.hbm [shape: bf16[3,3,16,16], index: 1, kind: input, shape index: {}]
  %s2 = inlined_call_operand.hbm [shape: f32[1,16], index: 2, kind: input, shape index: {}]
  %s3 = inlined_call_operand.hbm [shape: f32[2,14,14,16], index: 3, kind: output, shape index: {}]
  %s4 = sld [smem:[#allocation0]]
  $region57: #{tpu_custom_call.1} parent=0
    _
  %s6 = ssub.s32 1, %s4
  %s7 = scalar_select 0, %s6, %s4
  $region1: #{tpu_custom_call.1} parent=0
    #allocation2 [shape = 'u8[262144]{0}', space=vmem, size = 0x40000, scoped, tag = 'input window, operand 0']
    #allocation3 [shape = 's32[2]{0}', space=sflag, size = 0x8, scoped, tag = 'scoped memory for tpu_custom_call.1']
    #allocation4 [shape = 's32[2]{0}', space=sflag, size = 0x8, scoped, tag = 'scoped memory for tpu_custom_call.1']
    #allocation5 [shape = 'u8[36864]{0}', space=vmem, size = 0x9000, scoped, tag = 'input window, operand 1, single buffered']
    #allocation6 [shape = 's32[1]{0}', space=sflag, size = 0x4, scoped, tag = 'scoped memory for tpu_custom_call.1']
    #allocation7 [shape = 'u8[512]{0}', space=vmem, size = 0x400, scoped, tag = 'input window, operand 2, single buffered']
    #allocation8 [shape = 'u8[229376]{0}', space=vmem, size = 0x38000, scoped, tag = 'output window, operand 0']
    %8 = vsyncpa [#allocation3], 0
    %s9 = scalar_lea.sflag [#allocation3], 1
    %10 = vsyncpa %s9, 0
    %11 = vsyncpa [#allocation6], 0
    %12 = vsyncpa [#allocation4], 0
    %s13 = scalar_lea.sflag [#allocation4], 1
    %14 = vsyncpa %s13, 0
    loop: start=0, step=1, limit=4
    $region2: #{tpu_custom_call.1} parent=1 // loop_pre_header
      _
    $region3: #{tpu_custom_call.1} parent=1 // loop_header
      %s16 = sphi 0, %s20
      %p17 = scmp.ge.s32.totalorder %s16, 4
      %s26 = sphi 0, %s28
      %s29 = sphi 0, %s26
      %s30 = sphi 0, %s29
      %s46 = sphi 0, %s30
      %s50 = sphi 0, %s50
      %s52 = sphi 0, %s50
      %s53 = sphi 0, %s52
      %s67 = sphi 0, %s53
      %s71 = sphi 0, %s71
      %s73 = sphi 0, %s71
      %s74 = sphi 0, %s73
      %s88 = sphi 0, %s74
      %s94 = sphi 0, %s96
      %s97 = sphi 0, %s94
      %s98 = sphi 0, %s97
      %s114 = sphi 0, %s98
    $region4: #{tpu_custom_call.1} parent=1 // loop_header_branch
      %19 = sbr.rel (%p17) target = $region8
    $region5: #{tpu_custom_call.1} parent=1 // loop_body
      %s21 = ssub.s32 %s16, 1
      %s22 = ssub.s32 %s16, 2
      %s23 = sadd.s32 %s16, 1
      %s24 = ssub.s32 %s16, %s23
      %p25 = scmp.eq.s32.totalorder %s24, 0
      %s27 = sadd.s32 %s26, 1
      %s28 = scalar_select %p25, %s26, %s27
      %p31 = pneg %p25
      %p32 = scmp.eq.s32.totalorder %s16, 1
      %p33 = por %p31, %p32
      %p34 = scmp.ne.s32.totalorder %s26, %s29
      %p35 = scmp.eq.s32.totalorder %s16, 0
      %p36 = por %p34, %p35
      %p37 = scmp.ne.s32.totalorder %s26, %s29
      %p38 = scmp.eq.s32.totalorder %s21, 1
      %p39 = por %p37, %p38
      %p40 = scmp.ne.s32.totalorder %s29, %s30
      %p41 = scmp.eq.s32.totalorder %s21, 0
      %p42 = por %p40, %p41
      %p43 = scmp.ne.s32.totalorder %s29, %s30
      %p44 = scmp.eq.s32.totalorder %s22, 1
      %p45 = por %p43, %p44
      %p47 = scmp.ne.s32.totalorder %s30, %s46
      %p48 = scmp.eq.s32.totalorder %s22, 0
      %p49 = por %p47, %p48
      %s51 = sadd.s32 %s50, 1
      %p54 = scmp.eq.s32.totalorder %s16, 1
      %p55 = scmp.ne.s32.totalorder %s50, %s52
      %p56 = scmp.eq.s32.totalorder %s16, 0
      %p57 = por %p55, %p56
      %p58 = scmp.ne.s32.totalorder %s50, %s52
      %p59 = scmp.eq.s32.totalorder %s21, 1
      %p60 = por %p58, %p59
      %p61 = scmp.ne.s32.totalorder %s52, %s53
      %p62 = scmp.eq.s32.totalorder %s21, 0
      %p63 = por %p61, %p62
      %p64 = scmp.ne.s32.totalorder %s52, %s53
      %p65 = scmp.eq.s32.totalorder %s22, 1
      %p66 = por %p64, %p65
      %p68 = scmp.ne.s32.totalorder %s53, %s67
      %p69 = scmp.eq.s32.totalorder %s22, 0
      %p70 = por %p68, %p69
      %s72 = sadd.s32 %s71, 1
      %p75 = scmp.eq.s32.totalorder %s16, 1
      %p76 = scmp.ne.s32.totalorder %s71, %s73
      %p77 = scmp.eq.s32.totalorder %s16, 0
      %p78 = por %p76, %p77
      %p79 = scmp.ne.s32.totalorder %s71, %s73
      %p80 = scmp.eq.s32.totalorder %s21, 1
      %p81 = por %p79, %p80
      %p82 = scmp.ne.s32.totalorder %s73, %s74
      %p83 = scmp.eq.s32.totalorder %s21, 0
      %p84 = por %p82, %p83
      %p85 = scmp.ne.s32.totalorder %s73, %s74
      %p86 = scmp.eq.s32.totalorder %s22, 1
      %p87 = por %p85, %p86
      %p89 = scmp.ne.s32.totalorder %s74, %s88
      %p90 = scmp.eq.s32.totalorder %s22, 0
      %p91 = por %p89, %p90
      %s92 = ssub.s32 %s16, %s23
      %p93 = scmp.eq.s32.totalorder %s92, 0
      %s95 = sadd.s32 %s94, 1
      %s96 = scalar_select %p93, %s94, %s95
      %p99 = pneg %p93
      %p100 = scmp.eq.s32.totalorder %s16, 1
      %p101 = por %p99, %p100
      %p102 = scmp.ne.s32.totalorder %s94, %s97
      %p103 = scmp.eq.s32.totalorder %s16, 0
      %p104 = por %p102, %p103
      %p105 = scmp.ne.s32.totalorder %s94, %s97
      %p106 = scmp.eq.s32.totalorder %s21, 1
      %p107 = por %p105, %p106
      %p108 = scmp.ne.s32.totalorder %s97, %s98
      %p109 = scmp.eq.s32.totalorder %s21, 0
      %p110 = por %p108, %p109
      %p111 = scmp.ne.s32.totalorder %s97, %s98
      %p112 = scmp.eq.s32.totalorder %s22, 1
      %p113 = por %p111, %p112
      %p115 = scmp.ne.s32.totalorder %s98, %s114
      %p116 = scmp.eq.s32.totalorder %s22, 0
      %p117 = por %p115, %p116
      %p118 = scmp.le.s32.totalorder 1, %s16
      %p119 = scmp.lt.s32.totalorder %s16, 3
      %p120 = pnand %p118, %p119
      %p121 = pneg %p120
      // Predicated region
      $region9: #{tpu_custom_call.1} parent=5 // pred_check
        _
      $region10: #{tpu_custom_call.1} parent=5 // pred_check_branch
        %123 = sbr.rel (%p120) target = $region12
      $region11: #{tpu_custom_call.1} parent=5 // pred_region
        %s124 = ssub.s32 %s16, 1
        // Predicated region
        $region13: #{tpu_custom_call.1} parent=11 // pred_check
          %p125 = pneg %p63
        $region14: #{tpu_custom_call.1} parent=11 // pred_check_branch
          %127 = sbr.rel (%p125) target = $region16
        $region15: #{tpu_custom_call.1} parent=11 // pred_region
          %s129 = ssub.s32 1152, 1152
          %130 = vsyncadd [#allocation6], %s129
          %s131 = sshll.u32 [#allocation5], 4
          %s132 = int_to_ptr.vmem [resolvable:$true] %s131
          %137 = dma.hbm_to_vmem [thread:$0]  %s1, 1152, %s132, [#allocation6], 64, 64, 4
        $region16: #{tpu_custom_call.1} parent=11 // pred_fallthru
          _
        // Predicated region
        $region17: #{tpu_custom_call.1} parent=11 // pred_check
          %p138 = pneg %p84
        $region18: #{tpu_custom_call.1} parent=11 // pred_check_branch
          %140 = sbr.rel (%p138) target = $region20
        $region19: #{tpu_custom_call.1} parent=11 // pred_region
          %s142 = ssub.s32 16, 16
          %143 = vsyncadd [#allocation6], %s142
          %s145 = sshll.u32 [#allocation7], 4
          %s146 = int_to_ptr.vmem [resolvable:$true] %s145
          %148 = dma.hbm_to_vmem [thread:$0]  %s2, 16, %s146, [#allocation6]
        $region20: #{tpu_custom_call.1} parent=11 // pred_fallthru
          _
      $region12: #{tpu_custom_call.1} parent=5 // pred_fallthru
        _
      %p149 = scmp.lt.s32.totalorder %s16, 2
      // Predicated region
      $region21: #{tpu_custom_call.1} parent=5 // pred_check
        %p150 = pneg %p149
      $region22: #{tpu_custom_call.1} parent=5 // pred_check_branch
        %152 = sbr.rel (%p150) target = $region24
      $region23: #{tpu_custom_call.1} parent=5 // pred_region
        // Predicated region
        $region25: #{tpu_custom_call.1} parent=23 // pred_check
          %p153 = pneg %p36
        $region26: #{tpu_custom_call.1} parent=23 // pred_check_branch
          %155 = sbr.rel (%p153) target = $region28
        $region27: #{tpu_custom_call.1} parent=23 // pred_region
          %s156 = sand.u32 %s26, 1
          %s157 = scalar_lea.sflag [#allocation3], %s156
          %s158 = sand.u32 %s26, 1
          %s159 = smul.addr %s158, 256
          %s160 = scalar_lea.vmem [#allocation2], %s159
          %s162 = ssub.s32 4096, 4096
          %163 = vsyncadd %s157, %s162
          %s164 = smul.addr %s16, 32
          %s165 = smul.addr %s164, 128
          %s166 = scalar_lea.hbm %s0, %s165
          %s167 = sshll.u32 %s160, 4
          %s168 = int_to_ptr.vmem [resolvable:$true] %s167
          %173 = dma.hbm_to_vmem [thread:$0]  %s166, 4096, %s168, %s157, 128, 128, 8
        $region28: #{tpu_custom_call.1} parent=23 // pred_fallthru
          _
      $region24: #{tpu_custom_call.1} parent=5 // pred_fallthru
        _
      %p174 = scmp.le.s32.totalorder 1, %s16
      %p175 = scmp.lt.s32.totalorder %s16, 3
      %p176 = pnand %p174, %p175
      %p177 = pneg %p176
      // Predicated region
      $region29: #{tpu_custom_call.1} parent=5 // pred_check
        _
      $region30: #{tpu_custom_call.1} parent=5 // pred_check_branch
        %179 = sbr.rel (%p176) target = $region32
      $region31: #{tpu_custom_call.1} parent=5 // pred_region
        %s180 = ssub.s32 %s16, 1
        %s181 = sand.u32 %s29, 1
        %s182 = scalar_lea.sflag [#allocation3], %s181
        %s183 = sand.u32 %s29, 1
        %s184 = smul.addr %s183, 256
        %s185 = scalar_lea.vmem [#allocation2], %s184
        // Predicated region
        $region33: #{tpu_custom_call.1} parent=31 // pred_check
          %p186 = pneg %p42
        $region34: #{tpu_custom_call.1} parent=31 // pred_check_branch
          %188 = sbr.rel (%p186) target = $region36
        $region35: #{tpu_custom_call.1} parent=31 // pred_region
          %189 = dma.done %s182, 4096
        $region36: #{tpu_custom_call.1} parent=31 // pred_fallthru
          _
        // Predicated region
        $region37: #{tpu_custom_call.1} parent=31 // pred_check
          %p190 = pneg %p63
        $region38: #{tpu_custom_call.1} parent=31 // pred_check_branch
          %192 = sbr.rel (%p190) target = $region40
        $region39: #{tpu_custom_call.1} parent=31 // pred_region
          %193 = dma.done [#allocation6], 1152
        $region40: #{tpu_custom_call.1} parent=31 // pred_fallthru
          _
        // Predicated region
        $region41: #{tpu_custom_call.1} parent=31 // pred_check
          %p194 = pneg %p84
        $region42: #{tpu_custom_call.1} parent=31 // pred_check_branch
          %196 = sbr.rel (%p194) target = $region44
        $region43: #{tpu_custom_call.1} parent=31 // pred_region
          %197 = dma.done [#allocation6], 16
        $region44: #{tpu_custom_call.1} parent=31 // pred_fallthru
          _
        %s198 = sand.u32 %s29, 1
        %s199 = scalar_lea.sflag [#allocation3], %s198
        %s200 = sand.u32 %s29, 1
        %s201 = smul.addr %s200, 256
        %s202 = scalar_lea.vmem [#allocation2], %s201
        %p203 = pneg %p42
        %p204 = pneg %p39
        %p205 = pneg %p63
        %p206 = pneg %p60
        %p207 = pneg %p84
        %p208 = pneg %p81
        %p209 = pneg %p110
        %p210 = pneg %p107
        %s211 = sand.u32 %s97, 1
        %s212 = scalar_lea.sflag [#allocation4], %s211
        %s213 = sand.u32 %s97, 1
        %s214 = smul.addr %s213, 224
        %s215 = scalar_lea.vmem [#allocation8], %s214
        %v217 = vld [vmem:[#allocation7] sm:$0x1]
        %v218 = vld [vmem:[%s185] sm:$0xff]
        %v219 = vld [vmem:[%s185 + $0x8] sm:$0xff]
        %v220 = vld [vmem:[%s185 + $0x10] sm:$0xff]
        %v221 = vld [vmem:[%s185 + $0x18] sm:$0xff]
        %v222 = vld [vmem:[%s185 + $0x20] sm:$0xff]
        %v223 = vld [vmem:[%s185 + $0x28] sm:$0xff]
        %v224 = vld [vmem:[%s185 + $0x30] sm:$0xff]
        %v225 = vld [vmem:[%s185 + $0x38] sm:$0xff]
        %v226 = vld [vmem:[%s185 + $0x40] sm:$0xff]
        %v227 = vld [vmem:[%s185 + $0x48] sm:$0xff]
        %v228 = vld [vmem:[%s185 + $0x50] sm:$0xff]
        %v229 = vld [vmem:[%s185 + $0x58] sm:$0xff]
        %v230 = vld [vmem:[%s185 + $0x60] sm:$0xff]
        %v231 = vld [vmem:[%s185 + $0x68] sm:$0xff]
        %v232 = vld [vmem:[%s185 + $0x70] sm:$0xff]
        %v233 = vld [vmem:[%s185 + $0x78] sm:$0xff]
        %v234 = vld [vmem:[%s185 + $0x80] sm:$0xff]
        %v235 = vld [vmem:[%s185 + $0x88] sm:$0xff]
        %v236 = vld [vmem:[%s185 + $0x90] sm:$0xff]
        %v237 = vld [vmem:[%s185 + $0x98] sm:$0xff]
        %v238 = vld [vmem:[%s185 + $0xa0] sm:$0xff]
        %v239 = vld [vmem:[%s185 + $0xa8] sm:$0xff]
        %v240 = vld [vmem:[%s185 + $0xb0] sm:$0xff]
        %v241 = vld [vmem:[%s185 + $0xb8] sm:$0xff]
        %v242 = vld [vmem:[%s185 + $0xc0] sm:$0xff]
        %v243 = vld [vmem:[%s185 + $0xc8] sm:$0xff]
        %v244 = vld [vmem:[%s185 + $0xd0] sm:$0xff]
        %v245 = vld [vmem:[%s185 + $0xd8] sm:$0xff]
        %v246 = vld [vmem:[%s185 + $0xe0] sm:$0xff]
        %v247 = vld [vmem:[%s185 + $0xe8] sm:$0xff]
        %v248 = vld [vmem:[%s185 + $0xf0] sm:$0xff]
        %v249 = vld [vmem:[%s185 + $0xf8] sm:$0xff]
        %v250 = vpack.c.bf16 %v219, %v218
        %v251 = vpack.c.bf16 %v221, %v220
        %v252 = vpack.c.bf16 %v223, %v222
        %v253 = vpack.c.bf16 %v225, %v224
        %v254 = vpack.c.bf16 %v227, %v226
        %v255 = vpack.c.bf16 %v229, %v228
        %v256 = vpack.c.bf16 %v231, %v230
        %v257 = vpack.c.bf16 %v233, %v232
        %v258 = vpack.c.bf16 %v235, %v234
        %v259 = vpack.c.bf16 %v237, %v236
        %v260 = vpack.c.bf16 %v239, %v238
        %v261 = vpack.c.bf16 %v241, %v240
        %v262 = vpack.c.bf16 %v243, %v242
        %v263 = vpack.c.bf16 %v245, %v244
        %v264 = vpack.c.bf16 %v247, %v246
        %v265 = vpack.c.bf16 %v249, %v248
        %v266 = vld [vmem:[#allocation5] sm:$0xf]
        %v267 = vld [vmem:[#allocation5 + $0x4] sm:$0xf]
        %s268 = scalar_lea.vmem [#allocation5], 24
        %v269 = vld [vmem:[%s268] sm:$0xf]
        %v270 = vld [vmem:[%s268 + $0x4] sm:$0xf]
        %v273 = vunpack.c.l.b16 %v269
        %v274 = vunpack.c.l.b16 %v270
        %v275 = vpack.c.b16 %v274, %v273
        %vm277 = vcmask 130048
        %v279 = vsel %vm277, %v251, 0
        %v282 = vsel %vm277, %v252, 0
        %v285 = vsel %vm277, %v253, 0
        %v288 = vsel %vm277, %v254, 0
        %v291 = vsel %vm277, %v255, 0
        %v294 = vsel %vm277, %v256, 0
        %v297 = vsel %vm277, %v257, 0
        %v300 = vsel %vm277, %v258, 0
        %v303 = vsel %vm277, %v259, 0
        %v306 = vsel %vm277, %v260, 0
        %v309 = vsel %vm277, %v261, 0
        %v312 = vsel %vm277, %v262, 0
        %v315 = vsel %vm277, %v263, 0
        %v318 = vsel %vm277, %v264, 0
        %320 = vmatprep.subr.bf16.mxu0 0
        %321 = vmatpush1.bf16.msra.mxu0 %v275
        %322 = vmatprep.subr.bf16.mxu0 0
        %323 = vmatpush1.bf16.msra.mxu0 0
        %324 = vmatprep.subr.bf16.mxu0 0
        %325 = vmatpush1.bf16.msra.mxu0 0
        %326 = vmatprep.subr.bf16.mxu0 0
        %327 = vmatpush1.bf16.msra.mxu0 0
        %328 = vmatprep.subr.bf16.mxu0 0
        %329 = vmatpush1.bf16.msra.mxu0 0
        %330 = vmatprep.subr.bf16.mxu0 0
        %331 = vmatpush1.bf16.msra.mxu0 0
        %332 = vmatprep.subr.bf16.mxu0 0
        %333 = vmatpush1.bf16.msra.mxu0 0
        %334 = vmatprep.subr.bf16.mxu0 0
        %335 = vmatpush1.bf16.msra.mxu0 0
        %336 = vmatprep.subr.bf16.mxu0 0
        %337 = vmatpush1.bf16.msra.mxu0 0
        %338 = vmatprep.subr.bf16.mxu0 0
        %339 = vmatpush1.bf16.msra.mxu0 0
        %340 = vmatprep.subr.bf16.mxu0 0
        %341 = vmatpush1.bf16.msra.mxu0 0
        %342 = vmatprep.subr.bf16.mxu0 0
        %343 = vmatpush1.bf16.msra.mxu0 0
        %344 = vmatprep.subr.bf16.mxu0 0
        %345 = vmatpush1.bf16.msra.mxu0 0
        %346 = vmatprep.subr.bf16.mxu0 0
        %347 = vmatpush1.bf16.msra.mxu0 0
        %348 = vmatprep.subr.bf16.mxu0 0
        %349 = vmatpush1.bf16.msra.mxu0 0
        %350 = vmatprep.subr.bf16.mxu0 0
        %351 = vmatpush1.bf16.msra.mxu0 0
        %352 = vmatprep.mubr.bf16.mxu0 0
        %353 = vmatmul.mubr.bf16.gmra.mrb[0].mxu0 %v279
        %v354 = vpop.f32.mrb[0].mxu0
        %v355 = vadd.f32 0.0, %v354
        %v356 = vpop.f32.mrb[0].mxu0
        %v357 = vpop.f32.mrb[0].mxu0
        %v358 = vadd.f32 0.0, %v357
        %v359 = vpop.f32.mrb[0].mxu0
        %360 = vmatprep.mubr.bf16.mxu0 0
        %361 = vmatmul.mubr.bf16.gmra.mrb[0].mxu0 %v282
        %v362 = vpop.f32.mrb[0].mxu0
        %v363 = vadd.f32 0.0, %v362
        %v364 = vpop.f32.mrb[0].mxu0
        %v365 = vpop.f32.mrb[0].mxu0
        %v366 = vadd.f32 0.0, %v365
        %v367 = vpop.f32.mrb[0].mxu0
        %368 = vmatprep.mubr.bf16.mxu0 0
        %369 = vmatmul.mubr.bf16.gmra.mrb[0].mxu0 %v285
        %v370 = vpop.f32.mrb[0].mxu0
        %v371 = vadd.f32 0.0, %v370
        %v372 = vpop.f32.mrb[0].mxu0
        %v373 = vpop.f32.mrb[0].mxu0
        %v374 = vadd.f32 0.0, %v373
        %v375 = vpop.f32.mrb[0].mxu0
        %376 = vmatprep.mubr.bf16.mxu0 0
        %377 = vmatmul.mubr.bf16.gmra.mrb[0].mxu0 %v288
        %v378 = vpop.f32.mrb[0].mxu0
        %v379 = vadd.f32 0.0, %v378
        %v380 = vpop.f32.mrb[0].mxu0
        %v381 = vpop.f32.mrb[0].mxu0
        %v382 = vadd.f32 0.0, %v381
        %v383 = vpop.f32.mrb[0].mxu0
        %384 = vmatprep.mubr.bf16.mxu0 0
        %385 = vmatmul.mubr.bf16.gmra.mrb[0].mxu0 %v291
        %v386 = vpop.f32.mrb[0].mxu0
        %v387 = vadd.f32 0.0, %v386
        %v388 = vpop.f32.mrb[0].mxu0
        %v389 = vpop.f32.mrb[0].mxu0
        %v390 = vadd.f32 0.0, %v389
        %v391 = vpop.f32.mrb[0].mxu0
        %392 = vmatprep.mubr.bf16.mxu0 0
        %393 = vmatmul.mubr.bf16.gmra.mrb[0].mxu0 %v294
        %v394 = vpop.f32.mrb[0].mxu0
        %v395 = vadd.f32 0.0, %v394
        %v396 = vpop.f32.mrb[0].mxu0
        %v397 = vpop.f32.mrb[0].mxu0
        %v398 = vadd.f32 0.0, %v397
        %v399 = vpop.f32.mrb[0].mxu0
        %400 = vmatprep.mubr.bf16.mxu0 0
        %401 = vmatmul.mubr.bf16.gmra.mrb[0].mxu0 %v297
        %v402 = vpop.f32.mrb[0].mxu0
        %v403 = vadd.f32 0.0, %v402
        %v404 = vpop.f32.mrb[0].mxu0
        %v405 = vpop.f32.mrb[0].mxu0
        %v406 = vadd.f32 0.0, %v405
        %v407 = vpop.f32.mrb[0].mxu0
        %408 = vmatprep.mubr.bf16.mxu0 0
        %409 = vmatmul.mubr.bf16.gmra.mrb[0].mxu0 %v300
        %v410 = vpop.f32.mrb[0].mxu0
        %v411 = vadd.f32 0.0, %v410
        %v412 = vpop.f32.mrb[0].mxu0
        %v413 = vpop.f32.mrb[0].mxu0
        %v414 = vadd.f32 0.0, %v413
        %v415 = vpop.f32.mrb[0].mxu0
        %416 = vmatprep.mubr.bf16.mxu0 0
        %417 = vmatmul.mubr.bf16.gmra.mrb[0].mxu0 %v303
        %v418 = vpop.f32.mrb[0].mxu0
        %v419 = vadd.f32 0.0, %v418
        %v420 = vpop.f32.mrb[0].mxu0
        %v421 = vpop.f32.mrb[0].mxu0
        %v422 = vadd.f32 0.0, %v421
        %v423 = vpop.f32.mrb[0].mxu0
        %424 = vmatprep.mubr.bf16.mxu0 0
        %425 = vmatmul.mubr.bf16.gmra.mrb[0].mxu0 %v306
        %v426 = vpop.f32.mrb[0].mxu0
        %v427 = vadd.f32 0.0, %v426
        %v428 = vpop.f32.mrb[0].mxu0
        %v429 = vpop.f32.mrb[0].mxu0
        %v430 = vadd.f32 0.0, %v429
        %v431 = vpop.f32.mrb[0].mxu0
        %432 = vmatprep.mubr.bf16.mxu0 0
        %433 = vmatmul.mubr.bf16.gmra.mrb[0].mxu0 %v309
        %v434 = vpop.f32.mrb[0].mxu0
        %v435 = vadd.f32 0.0, %v434
        %v436 = vpop.f32.mrb[0].mxu0
        %v437 = vpop.f32.mrb[0].mxu0
        %v438 = vadd.f32 0.0, %v437
        %v439 = vpop.f32.mrb[0].mxu0
        %440 = vmatprep.mubr.bf16.mxu0 0
        %441 = vmatmul.mubr.bf16.gmra.mrb[0].mxu0 %v312
        %v442 = vpop.f32.mrb[0].mxu0
        %v443 = vadd.f32 0.0, %v442
        %v444 = vpop.f32.mrb[0].mxu0
        %v445 = vpop.f32.mrb[0].mxu0
        %v446 = vadd.f32 0.0, %v445
        %v447 = vpop.f32.mrb[0].mxu0
        %448 = vmatprep.mubr.bf16.mxu0 0
        %449 = vmatmul.mubr.bf16.gmra.mrb[0].mxu0 %v315
        %v450 = vpop.f32.mrb[0].mxu0
        %v451 = vadd.f32 0.0, %v450
        %v452 = vpop.f32.mrb[0].mxu0
        %v453 = vpop.f32.mrb[0].mxu0
        %v454 = vadd.f32 0.0, %v453
        %v455 = vpop.f32.mrb[0].mxu0
        %456 = vmatprep.mubr.bf16.mxu0 0
        %457 = vmatmul.mubr.bf16.gmra.mrb[0].mxu0 %v318
        %v458 = vpop.f32.mrb[0].mxu0
        %v459 = vadd.f32 0.0, %v458
        %v460 = vpop.f32.mrb[0].mxu0
        %v461 = vpop.f32.mrb[0].mxu0
        %v462 = vadd.f32 0.0, %v461
        %v463 = vpop.f32.mrb[0].mxu0
        %464 = vdwg.mxu0
        %v467 = vunpack.c.l.b16 %v266
        %v468 = vunpack.c.l.b16 %v267
        %v469 = vpack.c.b16 %v468, %v467
        %v472 = vsel %vm277, %v250, 0
        %474 = vmatprep.subr.bf16.mxu0 0
        %475 = vmatpush1.bf16.msra.mxu0 %v469
        %476 = vmatprep.subr.bf16.mxu0 0
        %477 = vmatpush1.bf16.msra.mxu0 0
        %478 = vmatprep.subr.bf16.mxu0 0
        %479 = vmatpush1.bf16.msra.mxu0 0
        %480 = vmatprep.subr.bf16.mxu0 0
        %481 = vmatpush1.bf16.msra.mxu0 0
        %482 = vmatprep.subr.bf16.mxu0 0
        %483 = vmatpush1.bf16.msra.mxu0 0
        %484 = vmatprep.subr.bf16.mxu0 0
        %485 = vmatpush1.bf16.msra.mxu0 0
        %486 = vmatprep.subr.bf16.mxu0 0
        %487 = vmatpush1.bf16.msra.mxu0 0
        %488 = vmatprep.subr.bf16.mxu0 0
        %489 = vmatpush1.bf16.msra.mxu0 0
        %490 = vmatprep.subr.bf16.mxu0 0
        %491 = vmatpush1.bf16.msra.mxu0 0
        %492 = vmatprep.subr.bf16.mxu0 0
        %493 = vmatpush1.bf16.msra.mxu0 0
        %494 = vmatprep.subr.bf16.mxu0 0
        %495 = vmatpush1.bf16.msra.mxu0 0
        %496 = vmatprep.subr.bf16.mxu0 0
        %497 = vmatpush1.bf16.msra.mxu0 0
        %498 = vmatprep.subr.bf16.mxu0 0
        %499 = vmatpush1.bf16.msra.mxu0 0
        %500 = vmatprep.subr.bf16.mxu0 0
        %501 = vmatpush1.bf16.msra.mxu0 0
        %502 = vmatprep.subr.bf16.mxu0 0
        %503 = vmatpush1.bf16.msra.mxu0 0
        %504 = vmatprep.subr.bf16.mxu0 0
        %505 = vmatpush1.bf16.msra.mxu0 0
        %506 = vmatprep.mubr.bf16.mxu0 0
        %507 = vmatmul.mubr.bf16.gmra.mrb[0].mxu0 %v472
        %v508 = vpop.f32.mrb[0].mxu0
        %v509 = vadd.f32 %v355, %v508
        %v510 = vpop.f32.mrb[0].mxu0
        %v511 = vpop.f32.mrb[0].mxu0
        %v512 = vadd.f32 %v358, %v511
        %v513 = vpop.f32.mrb[0].mxu0
        %514 = vmatprep.mubr.bf16.mxu0 0
        %515 = vmatmul.mubr.bf16.gmra.mrb[0].mxu0 %v279
        %v516 = vpop.f32.mrb[0].mxu0
        %v517 = vadd.f32 %v363, %v516
        %v518 = vpop.f32.mrb[0].mxu0
        %v519 = vpop.f32.mrb[0].mxu0
        %v520 = vadd.f32 %v366, %v519
        %v521 = vpop.f32.mrb[0].mxu0
        %522 = vmatprep.mubr.bf16.mxu0 0
        %523 = vmatmul.mubr.bf16.gmra.mrb[0].mxu0 %v282
        %v524 = vpop.f32.mrb[0].mxu0
        %v525 = vadd.f32 %v371, %v524
        %v526 = vpop.f32.mrb[0].mxu0
        %v527 = vpop.f32.mrb[0].mxu0
        %v528 = vadd.f32 %v374, %v527
        %v529 = vpop.f32.mrb[0].mxu0
        %530 = vmatprep.mubr.bf16.mxu0 0
        %531 = vmatmul.mubr.bf16.gmra.mrb[0].mxu0 %v285
        %v532 = vpop.f32.mrb[0].mxu0
        %v533 = vadd.f32 %v379, %v532
        %v534 = vpop.f32.mrb[0].mxu0
        %v535 = vpop.f32.mrb[0].mxu0
        %v536 = vadd.f32 %v382, %v535
        %v537 = vpop.f32.mrb[0].mxu0
        %538 = vmatprep.mubr.bf16.mxu0 0
        %539 = vmatmul.mubr.bf16.gmra.mrb[0].mxu0 %v288
        %v540 = vpop.f32.mrb[0].mxu0
        %v541 = vadd.f32 %v387, %v540
        %v542 = vpop.f32.mrb[0].mxu0
        %v543 = vpop.f32.mrb[0].mxu0
        %v544 = vadd.f32 %v390, %v543
        %v545 = vpop.f32.mrb[0].mxu0
        %546 = vmatprep.mubr.bf16.mxu0 0
        %547 = vmatmul.mubr.bf16.gmra.mrb[0].mxu0 %v291
        %v548 = vpop.f32.mrb[0].mxu0
        %v549 = vadd.f32 %v395, %v548
        %v550 = vpop.f32.mrb[0].mxu0
        %v551 = vpop.f32.mrb[0].mxu0
        %v552 = vadd.f32 %v398, %v551
        %v553 = vpop.f32.mrb[0].mxu0
        %554 = vmatprep.mubr.bf16.mxu0 0
        %555 = vmatmul.mubr.bf16.gmra.mrb[0].mxu0 %v294
        %v556 = vpop.f32.mrb[0].mxu0
        %v557 = vadd.f32 %v403, %v556
        %v558 = vpop.f32.mrb[0].mxu0
        %v559 = vpop.f32.mrb[0].mxu0
        %v560 = vadd.f32 %v406, %v559
        %v561 = vpop.f32.mrb[0].mxu0
        %562 = vmatprep.mubr.bf16.mxu0 0
        %563 = vmatmul.mubr.bf16.gmra.mrb[0].mxu0 %v297
        %v564 = vpop.f32.mrb[0].mxu0
        %v565 = vadd.f32 %v411, %v564
        %v566 = vpop.f32.mrb[0].mxu0
        %v567 = vpop.f32.mrb[0].mxu0
        %v568 = vadd.f32 %v414, %v567
        %v569 = vpop.f32.mrb[0].mxu0
        %570 = vmatprep.mubr.bf16.mxu0 0
        %571 = vmatmul.mubr.bf16.gmra.mrb[0].mxu0 %v300
        %v572 = vpop.f32.mrb[0].mxu0
        %v573 = vadd.f32 %v419, %v572
        %v574 = vpop.f32.mrb[0].mxu0
        %v575 = vpop.f32.mrb[0].mxu0
        %v576 = vadd.f32 %v422, %v575
        %v577 = vpop.f32.mrb[0].mxu0
        %578 = vmatprep.mubr.bf16.mxu0 0
        %579 = vmatmul.mubr.bf16.gmra.mrb[0].mxu0 %v303
        %v580 = vpop.f32.mrb[0].mxu0
        %v581 = vadd.f32 %v427, %v580
        %v582 = vpop.f32.mrb[0].mxu0
        %v583 = vpop.f32.mrb[0].mxu0
        %v584 = vadd.f32 %v430, %v583
        %v585 = vpop.f32.mrb[0].mxu0
        %586 = vmatprep.mubr.bf16.mxu0 0
        %587 = vmatmul.mubr.bf16.gmra.mrb[0].mxu0 %v306
        %v588 = vpop.f32.mrb[0].mxu0
        %v589 = vadd.f32 %v435, %v588
        %v590 = vpop.f32.mrb[0].mxu0
        %v591 = vpop.f32.mrb[0].mxu0
        %v592 = vadd.f32 %v438, %v591
        %v593 = vpop.f32.mrb[0].mxu0
        %594 = vmatprep.mubr.bf16.mxu0 0
        %595 = vmatmul.mubr.bf16.gmra.mrb[0].mxu0 %v309
        %v596 = vpop.f32.mrb[0].mxu0
        %v597 = vadd.f32 %v443, %v596
        %v598 = vpop.f32.mrb[0].mxu0
        %v599 = vpop.f32.mrb[0].mxu0
        %v600 = vadd.f32 %v446, %v599
        %v601 = vpop.f32.mrb[0].mxu0
        %602 = vmatprep.mubr.bf16.mxu0 0
        %603 = vmatmul.mubr.bf16.gmra.mrb[0].mxu0 %v312
        %v604 = vpop.f32.mrb[0].mxu0
        %v605 = vadd.f32 %v451, %v604
        %v606 = vpop.f32.mrb[0].mxu0
        %v607 = vpop.f32.mrb[0].mxu0
        %v608 = vadd.f32 %v454, %v607
        %v609 = vpop.f32.mrb[0].mxu0
        %610 = vmatprep.mubr.bf16.mxu0 0
        %611 = vmatmul.mubr.bf16.gmra.mrb[0].mxu0 %v315
        %v612 = vpop.f32.mrb[0].mxu0
        %v613 = vadd.f32 %v459, %v612
        %v614 = vpop.f32.mrb[0].mxu0
        %v615 = vpop.f32.mrb[0].mxu0
        %v616 = vadd.f32 %v462, %v615
        %v617 = vpop.f32.mrb[0].mxu0
        %618 = vdwg.mxu0
        %s619 = scalar_lea.vmem [#allocation5], 48
        %v620 = vld [vmem:[%s619] sm:$0xf]
        %v621 = vld [vmem:[%s619 + $0x4] sm:$0xf]
        %v624 = vunpack.c.l.b16 %v620
        %v625 = vunpack.c.l.b16 %v621
        %v626 = vpack.c.b16 %v625, %v624
        %v629 = vsel %vm277, %v265, 0
        %631 = vmatprep.subr.bf16.mxu0 0
        %632 = vmatpush1.bf16.msra.mxu0 %v626
        %633 = vmatprep.subr.bf16.mxu0 0
        %634 = vmatpush1.bf16.msra.mxu0 0
        %635 = vmatprep.subr.bf16.mxu0 0
        %636 = vmatpush1.bf16.msra.mxu0 0
        %637 = vmatprep.subr.bf16.mxu0 0
        %638 = vmatpush1.bf16.msra.mxu0 0
        %639 = vmatprep.subr.bf16.mxu0 0
        %640 = vmatpush1.bf16.msra.mxu0 0
        %641 = vmatprep.subr.bf16.mxu0 0
        %642 = vmatpush1.bf16.msra.mxu0 0
        %643 = vmatprep.subr.bf16.mxu0 0
        %644 = vmatpush1.bf16.msra.mxu0 0
        %645 = vmatprep.subr.bf16.mxu0 0
        %646 = vmatpush1.bf16.msra.mxu0 0
        %647 = vmatprep.subr.bf16.mxu0 0
        %648 = vmatpush1.bf16.msra.mxu0 0
        %649 = vmatprep.subr.bf16.mxu0 0
        %650 = vmatpush1.bf16.msra.mxu0 0
        %651 = vmatprep.subr.bf16.mxu0 0
        %652 = vmatpush1.bf16.msra.mxu0 0
        %653 = vmatprep.subr.bf16.mxu0 0
        %654 = vmatpush1.bf16.msra.mxu0 0
        %655 = vmatprep.subr.bf16.mxu0 0
        %656 = vmatpush1.bf16.msra.mxu0 0
        %657 = vmatprep.subr.bf16.mxu0 0
        %658 = vmatpush1.bf16.msra.mxu0 0
        %659 = vmatprep.subr.bf16.mxu0 0
        %660 = vmatpush1.bf16.msra.mxu0 0
        %661 = vmatprep.subr.bf16.mxu0 0
        %662 = vmatpush1.bf16.msra.mxu0 0
        %663 = vmatprep.mubr.bf16.mxu0 0
        %664 = vmatmul.mubr.bf16.gmra.mrb[0].mxu0 %v282
        %v665 = vpop.f32.mrb[0].mxu0
        %v666 = vadd.f32 0.0, %v665
        %v667 = vpop.f32.mrb[0].mxu0
        %v668 = vpop.f32.mrb[0].mxu0
        %v669 = vadd.f32 0.0, %v668
        %v670 = vpop.f32.mrb[0].mxu0
        %671 = vmatprep.mubr.bf16.mxu0 0
        %672 = vmatmul.mubr.bf16.gmra.mrb[0].mxu0 %v285
        %v673 = vpop.f32.mrb[0].mxu0
        %v674 = vadd.f32 0.0, %v673
        %v675 = vpop.f32.mrb[0].mxu0
        %v676 = vpop.f32.mrb[0].mxu0
        %v677 = vadd.f32 0.0, %v676
        %v678 = vpop.f32.mrb[0].mxu0
        %679 = vmatprep.mubr.bf16.mxu0 0
        %680 = vmatmul.mubr.bf16.gmra.mrb[0].mxu0 %v288
        %v681 = vpop.f32.mrb[0].mxu0
        %v682 = vadd.f32 0.0, %v681
        %v683 = vpop.f32.mrb[0].mxu0
        %v684 = vpop.f32.mrb[0].mxu0
        %v685 = vadd.f32 0.0, %v684
        %v686 = vpop.f32.mrb[0].mxu0
        %687 = vmatprep.mubr.bf16.mxu0 0
        %688 = vmatmul.mubr.bf16.gmra.mrb[0].mxu0 %v291
        %v689 = vpop.f32.mrb[0].mxu0
        %v690 = vadd.f32 0.0, %v689
        %v691 = vpop.f32.mrb[0].mxu0
        %v692 = vpop.f32.mrb[0].mxu0
        %v693 = vadd.f32 0.0, %v692
        %v694 = vpop.f32.mrb[0].mxu0
        %695 = vmatprep.mubr.bf16.mxu0 0
        %696 = vmatmul.mubr.bf16.gmra.mrb[0].mxu0 %v294
        %v697 = vpop.f32.mrb[0].mxu0
        %v698 = vadd.f32 0.0, %v697
        %v699 = vpop.f32.mrb[0].mxu0
        %v700 = vpop.f32.mrb[0].mxu0
        %v701 = vadd.f32 0.0, %v700
        %v702 = vpop.f32.mrb[0].mxu0
        %703 = vmatprep.mubr.bf16.mxu0 0
        %704 = vmatmul.mubr.bf16.gmra.mrb[0].mxu0 %v297
        %v705 = vpop.f32.mrb[0].mxu0
        %v706 = vadd.f32 0.0, %v705
        %v707 = vpop.f32.mrb[0].mxu0
        %v708 = vpop.f32.mrb[0].mxu0
        %v709 = vadd.f32 0.0, %v708
        %v710 = vpop.f32.mrb[0].mxu0
        %711 = vmatprep.mubr.bf16.mxu0 0
        %712 = vmatmul.mubr.bf16.gmra.mrb[0].mxu0 %v300
        %v713 = vpop.f32.mrb[0].mxu0
        %v714 = vadd.f32 0.0, %v713
        %v715 = vpop.f32.mrb[0].mxu0
        %v716 = vpop.f32.mrb[0].mxu0
        %v717 = vadd.f32 0.0, %v716
        %v718 = vpop.f32.mrb[0].mxu0
        %719 = vmatprep.mubr.bf16.mxu0 0
        %720 = vmatmul.mubr.bf16.gmra.mrb[0].mxu0 %v303
        %v721 = vpop.f32.mrb[0].mxu0
        %v722 = vadd.f32 0.0, %v721
        %v723 = vpop.f32.mrb[0].mxu0
        %v724 = vpop.f32.mrb[0].mxu0
        %v725 = vadd.f32 0.0, %v724
        %v726 = vpop.f32.mrb[0].mxu0
        %727 = vmatprep.mubr.bf16.mxu0 0
        %728 = vmatmul.mubr.bf16.gmra.mrb[0].mxu0 %v306
        %v729 = vpop.f32.mrb[0].mxu0
        %v730 = vadd.f32 0.0, %v729
        %v731 = vpop.f32.mrb[0].mxu0
        %v732 = vpop.f32.mrb[0].mxu0
        %v733 = vadd.f32 0.0, %v732
        %v734 = vpop.f32.mrb[0].mxu0
        %735 = vmatprep.mubr.bf16.mxu0 0
        %736 = vmatmul.mubr.bf16.gmra.mrb[0].mxu0 %v309
        %v737 = vpop.f32.mrb[0].mxu0
        %v738 = vadd.f32 0.0, %v737
        %v739 = vpop.f32.mrb[0].mxu0
        %v740 = vpop.f32.mrb[0].mxu0
        %v741 = vadd.f32 0.0, %v740
        %v742 = vpop.f32.mrb[0].mxu0
        %743 = vmatprep.mubr.bf16.mxu0 0
        %744 = vmatmul.mubr.bf16.gmra.mrb[0].mxu0 %v312
        %v745 = vpop.f32.mrb[0].mxu0
        %v746 = vadd.f32 0.0, %v745
        %v747 = vpop.f32.mrb[0].mxu0
        %v748 = vpop.f32.mrb[0].mxu0
        %v749 = vadd.f32 0.0, %v748
        %v750 = vpop.f32.mrb[0].mxu0
        %751 = vmatprep.mubr.bf16.mxu0 0
        %752 = vmatmul.mubr.bf16.gmra.mrb[0].mxu0 %v315
        %v753 = vpop.f32.mrb[0].mxu0
        %v754 = vadd.f32 0.0, %v753
        %v755 = vpop.f32.mrb[0].mxu0
        %v756 = vpop.f32.mrb[0].mxu0
        %v757 = vadd.f32 0.0, %v756
        %v758 = vpop.f32.mrb[0].mxu0
        %759 = vmatprep.mubr.bf16.mxu0 0
        %760 = vmatmul.mubr.bf16.gmra.mrb[0].mxu0 %v318
        %v761 = vpop.f32.mrb[0].mxu0
        %v762 = vadd.f32 0.0, %v761
        %v763 = vpop.f32.mrb[0].mxu0
        %v764 = vpop.f32.mrb[0].mxu0
        %v765 = vadd.f32 0.0, %v764
        %v766 = vpop.f32.mrb[0].mxu0
        %767 = vmatprep.mubr.bf16.mxu0 0
        %768 = vmatmul.mubr.bf16.gmra.mrb[0].mxu0 %v629
        %v769 = vpop.f32.mrb[0].mxu0
        %v770 = vadd.f32 0.0, %v769
        %v771 = vpop.f32.mrb[0].mxu0
        %v772 = vpop.f32.mrb[0].mxu0
        %v773 = vadd.f32 0.0, %v772
        %v774 = vpop.f32.mrb[0].mxu0
        %775 = vdwg.mxu0
        %v776 = vadd.f32 %v509, %v666
        %v777 = vadd.f32 %v512, %v669
        %v778 = vadd.f32 %v517, %v674
        %v779 = vadd.f32 %v520, %v677
        %v780 = vadd.f32 %v525, %v682
        %v781 = vadd.f32 %v528, %v685
        %v782 = vadd.f32 %v533, %v690
        %v783 = vadd.f32 %v536, %v693
        %v784 = vadd.f32 %v541, %v698
        %v785 = vadd.f32 %v544, %v701
        %v786 = vadd.f32 %v549, %v706
        %v787 = vadd.f32 %v552, %v709
        %v788 = vadd.f32 %v557, %v714
        %v789 = vadd.f32 %v560, %v717
        %v790 = vadd.f32 %v565, %v722
        %v791 = vadd.f32 %v568, %v725
        %v792 = vadd.f32 %v573, %v730
        %v793 = vadd.f32 %v576, %v733
        %v794 = vadd.f32 %v581, %v738
        %v795 = vadd.f32 %v584, %v741
        %v796 = vadd.f32 %v589, %v746
        %v797 = vadd.f32 %v592, %v749
        %v798 = vadd.f32 %v597, %v754
        %v799 = vadd.f32 %v600, %v757
        %v800 = vadd.f32 %v605, %v762
        %v801 = vadd.f32 %v608, %v765
        %v802 = vadd.f32 %v613, %v770
        %v803 = vadd.f32 %v616, %v773
        %v804 = vshrl.u32 %v250, 16
        %v806 = vshll.u32 %v250, 16
        %v808 = vrot.slane %v806, 1
        %v809 = vor.u32 %v804, %v808
        %v810 = vshrl.u32 %v251, 16
        %v812 = vshll.u32 %v251, 16
        %v814 = vrot.slane %v812, 1
        %v815 = vor.u32 %v810, %v814
        %v816 = vshrl.u32 %v252, 16
        %v818 = vshll.u32 %v252, 16
        %v820 = vrot.slane %v818, 1
        %v821 = vor.u32 %v816, %v820
        %v822 = vshrl.u32 %v253, 16
        %v824 = vshll.u32 %v253, 16
        %v826 = vrot.slane %v824, 1
        %v827 = vor.u32 %v822, %v826
        %v828 = vshrl.u32 %v254, 16
        %v830 = vshll.u32 %v254, 16
        %v832 = vrot.slane %v830, 1
        %v833 = vor.u32 %v828, %v832
        %v834 = vshrl.u32 %v255, 16
        %v836 = vshll.u32 %v255, 16
        %v838 = vrot.slane %v836, 1
        %v839 = vor.u32 %v834, %v838
        %v840 = vshrl.u32 %v256, 16
        %v842 = vshll.u32 %v256, 16
        %v844 = vrot.slane %v842, 1
        %v845 = vor.u32 %v840, %v844
        %v846 = vshrl.u32 %v257, 16
        %v848 = vshll.u32 %v257, 16
        %v850 = vrot.slane %v848, 1
        %v851 = vor.u32 %v846, %v850
        %v852 = vshrl.u32 %v258, 16
        %v854 = vshll.u32 %v258, 16
        %v856 = vrot.slane %v854, 1
        %v857 = vor.u32 %v852, %v856
        %v858 = vshrl.u32 %v259, 16
        %v860 = vshll.u32 %v259, 16
        %v862 = vrot.slane %v860, 1
        %v863 = vor.u32 %v858, %v862
        %v864 = vshrl.u32 %v260, 16
        %v866 = vshll.u32 %v260, 16
        %v868 = vrot.slane %v866, 1
        %v869 = vor.u32 %v864, %v868
        %v870 = vshrl.u32 %v261, 16
        %v872 = vshll.u32 %v261, 16
        %v874 = vrot.slane %v872, 1
        %v875 = vor.u32 %v870, %v874
        %v876 = vshrl.u32 %v262, 16
        %v878 = vshll.u32 %v262, 16
        %v880 = vrot.slane %v878, 1
        %v881 = vor.u32 %v876, %v880
        %v882 = vshrl.u32 %v263, 16
        %v884 = vshll.u32 %v263, 16
        %v886 = vrot.slane %v884, 1
        %v887 = vor.u32 %v882, %v886
        %v888 = vshrl.u32 %v264, 16
        %v890 = vshll.u32 %v264, 16
        %v892 = vrot.slane %v890, 1
        %v893 = vor.u32 %v888, %v892
        %v894 = vshrl.u32 %v265, 16
        %v896 = vshll.u32 %v265, 16
        %v898 = vrot.slane %v896, 1
        %v899 = vor.u32 %v894, %v898
        %vm932 = vcmask 1047552
        %vm933 = vsmask.f32 7424
        %vm934 = vmand %vm932, %vm933
        %v935 = vsel %vm934, %v809, %v808
        %v936 = vsel %vm934, %v815, %v814
        %v937 = vsel %vm934, %v821, %v820
        %v938 = vsel %vm934, %v827, %v826
        %v939 = vsel %vm934, %v833, %v832
        %v940 = vsel %vm934, %v839, %v838
        %v941 = vsel %vm934, %v845, %v844
        %v942 = vsel %vm934, %v851, %v850
        %v943 = vsel %vm934, %v857, %v856
        %v944 = vsel %vm934, %v863, %v862
        %v945 = vsel %vm934, %v869, %v868
        %v946 = vsel %vm934, %v875, %v874
        %v947 = vsel %vm934, %v881, %v880
        %v948 = vsel %vm934, %v887, %v886
        %v949 = vsel %vm934, %v893, %v892
        %v950 = vsel %vm934, %v899, %v898
        %s951 = scalar_lea.vmem [#allocation5], 8
        %v952 = vld [vmem:[%s951] sm:$0xf]
        %v953 = vld [vmem:[%s951 + $0x4] sm:$0xf]
        %v956 = vunpack.c.l.b16 %v952
        %v957 = vunpack.c.l.b16 %v953
        %v958 = vpack.c.b16 %v957, %v956
        %v961 = vsel %vm277, %v935, 0
        %v964 = vsel %vm277, %v936, 0
        %v967 = vsel %vm277, %v937, 0
        %v970 = vsel %vm277, %v938, 0
        %v973 = vsel %vm277, %v939, 0
        %v976 = vsel %vm277, %v940, 0
        %v979 = vsel %vm277, %v941, 0
        %v982 = vsel %vm277, %v942, 0
        %v985 = vsel %vm277, %v943, 0
        %v988 = vsel %vm277, %v944, 0
        %v991 = vsel %vm277, %v945, 0
        %v994 = vsel %vm277, %v946, 0
        %v997 = vsel %vm277, %v947, 0
        %v1000 = vsel %vm277, %v948, 0
        %1002 = vmatprep.subr.bf16.mxu0 0
        %1003 = vmatpush1.bf16.msra.mxu0 %v958
        %1004 = vmatprep.subr.bf16.mxu0 0
        %1005 = vmatpush1.bf16.msra.mxu0 0
        %1006 = vmatprep.subr.bf16.mxu0 0
        %1007 = vmatpush1.bf16.msra.mxu0 0
        %1008 = vmatprep.subr.bf16.mxu0 0
        %1009 = vmatpush1.bf16.msra.mxu0 0
        %1010 = vmatprep.subr.bf16.mxu0 0
        %1011 = vmatpush1.bf16.msra.mxu0 0
        %1012 = vmatprep.subr.bf16.mxu0 0
        %1013 = vmatpush1.bf16.msra.mxu0 0
        %1014 = vmatprep.subr.bf16.mxu0 0
        %1015 = vmatpush1.bf16.msra.mxu0 0
        %1016 = vmatprep.subr.bf16.mxu0 0
        %1017 = vmatpush1.bf16.msra.mxu0 0
        %1018 = vmatprep.subr.bf16.mxu0 0
        %1019 = vmatpush1.bf16.msra.mxu0 0
        %1020 = vmatprep.subr.bf16.mxu0 0
        %1021 = vmatpush1.bf16.msra.mxu0 0
        %1022 = vmatprep.subr.bf16.mxu0 0
        %1023 = vmatpush1.bf16.msra.mxu0 0
        %1024 = vmatprep.subr.bf16.mxu0 0
        %1025 = vmatpush1.bf16.msra.mxu0 0
        %1026 = vmatprep.subr.bf16.mxu0 0
        %1027 = vmatpush1.bf16.msra.mxu0 0
        %1028 = vmatprep.subr.bf16.mxu0 0
        %1029 = vmatpush1.bf16.msra.mxu0 0
        %1030 = vmatprep.subr.bf16.mxu0 0
        %1031 = vmatpush1.bf16.msra.mxu0 0
        %1032 = vmatprep.subr.bf16.mxu0 0
        %1033 = vmatpush1.bf16.msra.mxu0 0
        %1034 = vmatprep.mubr.bf16.mxu0 0
        %1035 = vmatmul.mubr.bf16.gmra.mrb[0].mxu0 %v961
        %v1036 = vpop.f32.mrb[0].mxu0
        %v1037 = vadd.f32 0.0, %v1036
        %v1038 = vpop.f32.mrb[0].mxu0
        %v1039 = vpop.f32.mrb[0].mxu0
        %v1040 = vadd.f32 0.0, %v1039
        %v1041 = vpop.f32.mrb[0].mxu0
        %1042 = vmatprep.mubr.bf16.mxu0 0
        %1043 = vmatmul.mubr.bf16.gmra.mrb[0].mxu0 %v964
        %v1044 = vpop.f32.mrb[0].mxu0
        %v1045 = vadd.f32 0.0, %v1044
        %v1046 = vpop.f32.mrb[0].mxu0
        %v1047 = vpop.f32.mrb[0].mxu0
        %v1048 = vadd.f32 0.0, %v1047
        %v1049 = vpop.f32.mrb[0].mxu0
        %1050 = vmatprep.mubr.bf16.mxu0 0
        %1051 = vmatmul.mubr.bf16.gmra.mrb[0].mxu0 %v967
        %v1052 = vpop.f32.mrb[0].mxu0
        %v1053 = vadd.f32 0.0, %v1052
        %v1054 = vpop.f32.mrb[0].mxu0
        %v1055 = vpop.f32.mrb[0].mxu0
        %v1056 = vadd.f32 0.0, %v1055
        %v1057 = vpop.f32.mrb[0].mxu0
        %1058 = vmatprep.mubr.bf16.mxu0 0
        %1059 = vmatmul.mubr.bf16.gmra.mrb[0].mxu0 %v970
        %v1060 = vpop.f32.mrb[0].mxu0
        %v1061 = vadd.f32 0.0, %v1060
        %v1062 = vpop.f32.mrb[0].mxu0
        %v1063 = vpop.f32.mrb[0].mxu0
        %v1064 = vadd.f32 0.0, %v1063
        %v1065 = vpop.f32.mrb[0].mxu0
        %1066 = vmatprep.mubr.bf16.mxu0 0
        %1067 = vmatmul.mubr.bf16.gmra.mrb[0].mxu0 %v973
        %v1068 = vpop.f32.mrb[0].mxu0
        %v1069 = vadd.f32 0.0, %v1068
        %v1070 = vpop.f32.mrb[0].mxu0
        %v1071 = vpop.f32.mrb[0].mxu0
        %v1072 = vadd.f32 0.0, %v1071
        %v1073 = vpop.f32.mrb[0].mxu0
        %1074 = vmatprep.mubr.bf16.mxu0 0
        %1075 = vmatmul.mubr.bf16.gmra.mrb[0].mxu0 %v976
        %v1076 = vpop.f32.mrb[0].mxu0
        %v1077 = vadd.f32 0.0, %v1076
        %v1078 = vpop.f32.mrb[0].mxu0
        %v1079 = vpop.f32.mrb[0].mxu0
        %v1080 = vadd.f32 0.0, %v1079
        %v1081 = vpop.f32.mrb[0].mxu0
        %1082 = vmatprep.mubr.bf16.mxu0 0
        %1083 = vmatmul.mubr.bf16.gmra.mrb[0].mxu0 %v979
        %v1084 = vpop.f32.mrb[0].mxu0
        %v1085 = vadd.f32 0.0, %v1084
        %v1086 = vpop.f32.mrb[0].mxu0
        %v1087 = vpop.f32.mrb[0].mxu0
        %v1088 = vadd.f32 0.0, %v1087
        %v1089 = vpop.f32.mrb[0].mxu0
        %1090 = vmatprep.mubr.bf16.mxu0 0
        %1091 = vmatmul.mubr.bf16.gmra.mrb[0].mxu0 %v982
        %v1092 = vpop.f32.mrb[0].mxu0
        %v1093 = vadd.f32 0.0, %v1092
        %v1094 = vpop.f32.mrb[0].mxu0
        %v1095 = vpop.f32.mrb[0].mxu0
        %v1096 = vadd.f32 0.0, %v1095
        %v1097 = vpop.f32.mrb[0].mxu0
        %1098 = vmatprep.mubr.bf16.mxu0 0
        %1099 = vmatmul.mubr.bf16.gmra.mrb[0].mxu0 %v985
        %v1100 = vpop.f32.mrb[0].mxu0
        %v1101 = vadd.f32 0.0, %v1100
        %v1102 = vpop.f32.mrb[0].mxu0
        %v1103 = vpop.f32.mrb[0].mxu0
        %v1104 = vadd.f32 0.0, %v1103
        %v1105 = vpop.f32.mrb[0].mxu0
        %1106 = vmatprep.mubr.bf16.mxu0 0
        %1107 = vmatmul.mubr.bf16.gmra.mrb[0].mxu0 %v988
        %v1108 = vpop.f32.mrb[0].mxu0
        %v1109 = vadd.f32 0.0, %v1108
        %v1110 = vpop.f32.mrb[0].mxu0
        %v1111 = vpop.f32.mrb[0].mxu0
        %v1112 = vadd.f32 0.0, %v1111
        %v1113 = vpop.f32.mrb[0].mxu0
        %1114 = vmatprep.mubr.bf16.mxu0 0
        %1115 = vmatmul.mubr.bf16.gmra.mrb[0].mxu0 %v991
        %v1116 = vpop.f32.mrb[0].mxu0
        %v1117 = vadd.f32 0.0, %v1116
        %v1118 = vpop.f32.mrb[0].mxu0
        %v1119 = vpop.f32.mrb[0].mxu0
        %v1120 = vadd.f32 0.0, %v1119
        %v1121 = vpop.f32.mrb[0].mxu0
        %1122 = vmatprep.mubr.bf16.mxu0 0
        %1123 = vmatmul.mubr.bf16.gmra.mrb[0].mxu0 %v994
        %v1124 = vpop.f32.mrb[0].mxu0
        %v1125 = vadd.f32 0.0, %v1124
        %v1126 = vpop.f32.mrb[0].mxu0
        %v1127 = vpop.f32.mrb[0].mxu0
        %v1128 = vadd.f32 0.0, %v1127
        %v1129 = vpop.f32.mrb[0].mxu0
        %1130 = vmatprep.mubr.bf16.mxu0 0
        %1131 = vmatmul.mubr.bf16.gmra.mrb[0].mxu0 %v997
        %v1132 = vpop.f32.mrb[0].mxu0
        %v1133 = vadd.f32 0.0, %v1132
        %v1134 = vpop.f32.mrb[0].mxu0
        %v1135 = vpop.f32.mrb[0].mxu0
        %v1136 = vadd.f32 0.0, %v1135
        %v1137 = vpop.f32.mrb[0].mxu0
        %1138 = vmatprep.mubr.bf16.mxu0 0
        %1139 = vmatmul.mubr.bf16.gmra.mrb[0].mxu0 %v1000
        %v1140 = vpop.f32.mrb[0].mxu0
        %v1141 = vadd.f32 0.0, %v1140
        %v1142 = vpop.f32.mrb[0].mxu0
        %v1143 = vpop.f32.mrb[0].mxu0
        %v1144 = vadd.f32 0.0, %v1143
        %v1145 = vpop.f32.mrb[0].mxu0
        %1146 = vdwg.mxu0
        %v1147 = vadd.f32 %v776, %v1037
        %v1148 = vadd.f32 %v777, %v1040
        %v1149 = vadd.f32 %v778, %v1045
        %v1150 = vadd.f32 %v779, %v1048
        %v1151 = vadd.f32 %v780, %v1053
        %v1152 = vadd.f32 %v781, %v1056
        %v1153 = vadd.f32 %v782, %v1061
        %v1154 = vadd.f32 %v783, %v1064
        %v1155 = vadd.f32 %v784, %v1069
        %v1156 = vadd.f32 %v785, %v1072
        %v1157 = vadd.f32 %v786, %v1077
        %v1158 = vadd.f32 %v787, %v1080
        %v1159 = vadd.f32 %v788, %v1085
        %v1160 = vadd.f32 %v789, %v1088
        %v1161 = vadd.f32 %v790, %v1093
        %v1162 = vadd.f32 %v791, %v1096
        %v1163 = vadd.f32 %v792, %v1101
        %v1164 = vadd.f32 %v793, %v1104
        %v1165 = vadd.f32 %v794, %v1109
        %v1166 = vadd.f32 %v795, %v1112
        %v1167 = vadd.f32 %v796, %v1117
        %v1168 = vadd.f32 %v797, %v1120
        %v1169 = vadd.f32 %v798, %v1125
        %v1170 = vadd.f32 %v799, %v1128
        %v1171 = vadd.f32 %v800, %v1133
        %v1172 = vadd.f32 %v801, %v1136
        %v1173 = vadd.f32 %v802, %v1141
        %v1174 = vadd.f32 %v803, %v1144
        %s1175 = scalar_lea.vmem [#allocation5], 32
        %v1176 = vld [vmem:[%s1175] sm:$0xf]
        %v1177 = vld [vmem:[%s1175 + $0x4] sm:$0xf]
        %v1180 = vunpack.c.l.b16 %v1176
        %v1181 = vunpack.c.l.b16 %v1177
        %v1182 = vpack.c.b16 %v1181, %v1180
        %v1185 = vsel %vm277, %v949, 0
        %1187 = vmatprep.subr.bf16.mxu0 0
        %1188 = vmatpush1.bf16.msra.mxu0 %v1182
        %1189 = vmatprep.subr.bf16.mxu0 0
        %1190 = vmatpush1.bf16.msra.mxu0 0
        %1191 = vmatprep.subr.bf16.mxu0 0
        %1192 = vmatpush1.bf16.msra.mxu0 0
        %1193 = vmatprep.subr.bf16.mxu0 0
        %1194 = vmatpush1.bf16.msra.mxu0 0
        %1195 = vmatprep.subr.bf16.mxu0 0
        %1196 = vmatpush1.bf16.msra.mxu0 0
        %1197 = vmatprep.subr.bf16.mxu0 0
        %1198 = vmatpush1.bf16.msra.mxu0 0
        %1199 = vmatprep.subr.bf16.mxu0 0
        %1200 = vmatpush1.bf16.msra.mxu0 0
        %1201 = vmatprep.subr.bf16.mxu0 0
        %1202 = vmatpush1.bf16.msra.mxu0 0
        %1203 = vmatprep.subr.bf16.mxu0 0
        %1204 = vmatpush1.bf16.msra.mxu0 0
        %1205 = vmatprep.subr.bf16.mxu0 0
        %1206 = vmatpush1.bf16.msra.mxu0 0
        %1207 = vmatprep.subr.bf16.mxu0 0
        %1208 = vmatpush1.bf16.msra.mxu0 0
        %1209 = vmatprep.subr.bf16.mxu0 0
        %1210 = vmatpush1.bf16.msra.mxu0 0
        %1211 = vmatprep.subr.bf16.mxu0 0
        %1212 = vmatpush1.bf16.msra.mxu0 0
        %1213 = vmatprep.subr.bf16.mxu0 0
        %1214 = vmatpush1.bf16.msra.mxu0 0
        %1215 = vmatprep.subr.bf16.mxu0 0
        %1216 = vmatpush1.bf16.msra.mxu0 0
        %1217 = vmatprep.subr.bf16.mxu0 0
        %1218 = vmatpush1.bf16.msra.mxu0 0
        %1219 = vmatprep.mubr.bf16.mxu0 0
        %1220 = vmatmul.mubr.bf16.gmra.mrb[0].mxu0 %v964
        %v1221 = vpop.f32.mrb[0].mxu0
        %v1222 = vadd.f32 0.0, %v1221
        %v1223 = vpop.f32.mrb[0].mxu0
        %v1224 = vpop.f32.mrb[0].mxu0
        %v1225 = vadd.f32 0.0, %v1224
        %v1226 = vpop.f32.mrb[0].mxu0
        %1227 = vmatprep.mubr.bf16.mxu0 0
        %1228 = vmatmul.mubr.bf16.gmra.mrb[0].mxu0 %v967
        %v1229 = vpop.f32.mrb[0].mxu0
        %v1230 = vadd.f32 0.0, %v1229
        %v1231 = vpop.f32.mrb[0].mxu0
        %v1232 = vpop.f32.mrb[0].mxu0
        %v1233 = vadd.f32 0.0, %v1232
        %v1234 = vpop.f32.mrb[0].mxu0
        %1235 = vmatprep.mubr.bf16.mxu0 0
        %1236 = vmatmul.mubr.bf16.gmra.mrb[0].mxu0 %v970
        %v1237 = vpop.f32.mrb[0].mxu0
        %v1238 = vadd.f32 0.0, %v1237
        %v1239 = vpop.f32.mrb[0].mxu0
        %v1240 = vpop.f32.mrb[0].mxu0
        %v1241 = vadd.f32 0.0, %v1240
        %v1242 = vpop.f32.mrb[0].mxu0
        %1243 = vmatprep.mubr.bf16.mxu0 0
        %1244 = vmatmul.mubr.bf16.gmra.mrb[0].mxu0 %v973
        %v1245 = vpop.f32.mrb[0].mxu0
        %v1246 = vadd.f32 0.0, %v1245
        %v1247 = vpop.f32.mrb[0].mxu0
        %v1248 = vpop.f32.mrb[0].mxu0
        %v1249 = vadd.f32 0.0, %v1248
        %v1250 = vpop.f32.mrb[0].mxu0
        %1251 = vmatprep.mubr.bf16.mxu0 0
        %1252 = vmatmul.mubr.bf16.gmra.mrb[0].mxu0 %v976
        %v1253 = vpop.f32.mrb[0].mxu0
        %v1254 = vadd.f32 0.0, %v1253
        %v1255 = vpop.f32.mrb[0].mxu0
        %v1256 = vpop.f32.mrb[0].mxu0
        %v1257 = vadd.f32 0.0, %v1256
        %v1258 = vpop.f32.mrb[0].mxu0
        %1259 = vmatprep.mubr.bf16.mxu0 0
        %1260 = vmatmul.mubr.bf16.gmra.mrb[0].mxu0 %v979
        %v1261 = vpop.f32.mrb[0].mxu0
        %v1262 = vadd.f32 0.0, %v1261
        %v1263 = vpop.f32.mrb[0].mxu0
        %v1264 = vpop.f32.mrb[0].mxu0
        %v1265 = vadd.f32 0.0, %v1264
        %v1266 = vpop.f32.mrb[0].mxu0
        %1267 = vmatprep.mubr.bf16.mxu0 0
        %1268 = vmatmul.mubr.bf16.gmra.mrb[0].mxu0 %v982
        %v1269 = vpop.f32.mrb[0].mxu0
        %v1270 = vadd.f32 0.0, %v1269
        %v1271 = vpop.f32.mrb[0].mxu0
        %v1272 = vpop.f32.mrb[0].mxu0
        %v1273 = vadd.f32 0.0, %v1272
        %v1274 = vpop.f32.mrb[0].mxu0
        %1275 = vmatprep.mubr.bf16.mxu0 0
        %1276 = vmatmul.mubr.bf16.gmra.mrb[0].mxu0 %v985
        %v1277 = vpop.f32.mrb[0].mxu0
        %v1278 = vadd.f32 0.0, %v1277
        %v1279 = vpop.f32.mrb[0].mxu0
        %v1280 = vpop.f32.mrb[0].mxu0
        %v1281 = vadd.f32 0.0, %v1280
        %v1282 = vpop.f32.mrb[0].mxu0
        %1283 = vmatprep.mubr.bf16.mxu0 0
        %1284 = vmatmul.mubr.bf16.gmra.mrb[0].mxu0 %v988
        %v1285 = vpop.f32.mrb[0].mxu0
        %v1286 = vadd.f32 0.0, %v1285
        %v1287 = vpop.f32.mrb[0].mxu0
        %v1288 = vpop.f32.mrb[0].mxu0
        %v1289 = vadd.f32 0.0, %v1288
        %v1290 = vpop.f32.mrb[0].mxu0
        %1291 = vmatprep.mubr.bf16.mxu0 0
        %1292 = vmatmul.mubr.bf16.gmra.mrb[0].mxu0 %v991
        %v1293 = vpop.f32.mrb[0].mxu0
        %v1294 = vadd.f32 0.0, %v1293
        %v1295 = vpop.f32.mrb[0].mxu0
        %v1296 = vpop.f32.mrb[0].mxu0
        %v1297 = vadd.f32 0.0, %v1296
        %v1298 = vpop.f32.mrb[0].mxu0
        %1299 = vmatprep.mubr.bf16.mxu0 0
        %1300 = vmatmul.mubr.bf16.gmra.mrb[0].mxu0 %v994
        %v1301 = vpop.f32.mrb[0].mxu0
        %v1302 = vadd.f32 0.0, %v1301
        %v1303 = vpop.f32.mrb[0].mxu0
        %v1304 = vpop.f32.mrb[0].mxu0
        %v1305 = vadd.f32 0.0, %v1304
        %v1306 = vpop.f32.mrb[0].mxu0
        %1307 = vmatprep.mubr.bf16.mxu0 0
        %1308 = vmatmul.mubr.bf16.gmra.mrb[0].mxu0 %v997
        %v1309 = vpop.f32.mrb[0].mxu0
        %v1310 = vadd.f32 0.0, %v1309
        %v1311 = vpop.f32.mrb[0].mxu0
        %v1312 = vpop.f32.mrb[0].mxu0
        %v1313 = vadd.f32 0.0, %v1312
        %v1314 = vpop.f32.mrb[0].mxu0
        %1315 = vmatprep.mubr.bf16.mxu0 0
        %1316 = vmatmul.mubr.bf16.gmra.mrb[0].mxu0 %v1000
        %v1317 = vpop.f32.mrb[0].mxu0
        %v1318 = vadd.f32 0.0, %v1317
        %v1319 = vpop.f32.mrb[0].mxu0
        %v1320 = vpop.f32.mrb[0].mxu0
        %v1321 = vadd.f32 0.0, %v1320
        %v1322 = vpop.f32.mrb[0].mxu0
        %1323 = vmatprep.mubr.bf16.mxu0 0
        %1324 = vmatmul.mubr.bf16.gmra.mrb[0].mxu0 %v1185
        %v1325 = vpop.f32.mrb[0].mxu0
        %v1326 = vadd.f32 0.0, %v1325
        %v1327 = vpop.f32.mrb[0].mxu0
        %v1328 = vpop.f32.mrb[0].mxu0
        %v1329 = vadd.f32 0.0, %v1328
        %v1330 = vpop.f32.mrb[0].mxu0
        %1331 = vdwg.mxu0
        %v1332 = vadd.f32 %v1147, %v1222
        %v1333 = vadd.f32 %v1148, %v1225
        %v1334 = vadd.f32 %v1149, %v1230
        %v1335 = vadd.f32 %v1150, %v1233
        %v1336 = vadd.f32 %v1151, %v1238
        %v1337 = vadd.f32 %v1152, %v1241
        %v1338 = vadd.f32 %v1153, %v1246
        %v1339 = vadd.f32 %v1154, %v1249
        %v1340 = vadd.f32 %v1155, %v1254
        %v1341 = vadd.f32 %v1156, %v1257
        %v1342 = vadd.f32 %v1157, %v1262
        %v1343 = vadd.f32 %v1158, %v1265
        %v1344 = vadd.f32 %v1159, %v1270
        %v1345 = vadd.f32 %v1160, %v1273
        %v1346 = vadd.f32 %v1161, %v1278
        %v1347 = vadd.f32 %v1162, %v1281
        %v1348 = vadd.f32 %v1163, %v1286
        %v1349 = vadd.f32 %v1164, %v1289
        %v1350 = vadd.f32 %v1165, %v1294
        %v1351 = vadd.f32 %v1166, %v1297
        %v1352 = vadd.f32 %v1167, %v1302
        %v1353 = vadd.f32 %v1168, %v1305
        %v1354 = vadd.f32 %v1169, %v1310
        %v1355 = vadd.f32 %v1170, %v1313
        %v1356 = vadd.f32 %v1171, %v1318
        %v1357 = vadd.f32 %v1172, %v1321
        %v1358 = vadd.f32 %v1173, %v1326
        %v1359 = vadd.f32 %v1174, %v1329
        %s1360 = scalar_lea.vmem [#allocation5], 56
        %v1361 = vld [vmem:[%s1360] sm:$0xf]
        %v1362 = vld [vmem:[%s1360 + $0x4] sm:$0xf]
        %v1365 = vunpack.c.l.b16 %v1361
        %v1366 = vunpack.c.l.b16 %v1362
        %v1367 = vpack.c.b16 %v1366, %v1365
        %v1370 = vsel %vm277, %v950, 0
        %1372 = vmatprep.subr.bf16.mxu0 0
        %1373 = vmatpush1.bf16.msra.mxu0 %v1367
        %1374 = vmatprep.subr.bf16.mxu0 0
        %1375 = vmatpush1.bf16.msra.mxu0 0
        %1376 = vmatprep.subr.bf16.mxu0 0
        %1377 = vmatpush1.bf16.msra.mxu0 0
        %1378 = vmatprep.subr.bf16.mxu0 0
        %1379 = vmatpush1.bf16.msra.mxu0 0
        %1380 = vmatprep.subr.bf16.mxu0 0
        %1381 = vmatpush1.bf16.msra.mxu0 0
        %1382 = vmatprep.subr.bf16.mxu0 0
        %1383 = vmatpush1.bf16.msra.mxu0 0
        %1384 = vmatprep.subr.bf16.mxu0 0
        %1385 = vmatpush1.bf16.msra.mxu0 0
        %1386 = vmatprep.subr.bf16.mxu0 0
        %1387 = vmatpush1.bf16.msra.mxu0 0
        %1388 = vmatprep.subr.bf16.mxu0 0
        %1389 = vmatpush1.bf16.msra.mxu0 0
        %1390 = vmatprep.subr.bf16.mxu0 0
        %1391 = vmatpush1.bf16.msra.mxu0 0
        %1392 = vmatprep.subr.bf16.mxu0 0
        %1393 = vmatpush1.bf16.msra.mxu0 0
        %1394 = vmatprep.subr.bf16.mxu0 0
        %1395 = vmatpush1.bf16.msra.mxu0 0
        %1396 = vmatprep.subr.bf16.mxu0 0
        %1397 = vmatpush1.bf16.msra.mxu0 0
        %1398 = vmatprep.subr.bf16.mxu0 0
        %1399 = vmatpush1.bf16.msra.mxu0 0
        %1400 = vmatprep.subr.bf16.mxu0 0
        %1401 = vmatpush1.bf16.msra.mxu0 0
        %1402 = vmatprep.subr.bf16.mxu0 0
        %1403 = vmatpush1.bf16.msra.mxu0 0
        %1404 = vmatprep.mubr.bf16.mxu0 0
        %1405 = vmatmul.mubr.bf16.gmra.mrb[0].mxu0 %v967
        %v1406 = vpop.f32.mrb[0].mxu0
        %v1407 = vadd.f32 0.0, %v1406
        %v1408 = vpop.f32.mrb[0].mxu0
        %v1409 = vpop.f32.mrb[0].mxu0
        %v1410 = vadd.f32 0.0, %v1409
        %v1411 = vpop.f32.mrb[0].mxu0
        %1412 = vmatprep.mubr.bf16.mxu0 0
        %1413 = vmatmul.mubr.bf16.gmra.mrb[0].mxu0 %v970
        %v1414 = vpop.f32.mrb[0].mxu0
        %v1415 = vadd.f32 0.0, %v1414
        %v1416 = vpop.f32.mrb[0].mxu0
        %v1417 = vpop.f32.mrb[0].mxu0
        %v1418 = vadd.f32 0.0, %v1417
        %v1419 = vpop.f32.mrb[0].mxu0
        %1420 = vmatprep.mubr.bf16.mxu0 0
        %1421 = vmatmul.mubr.bf16.gmra.mrb[0].mxu0 %v973
        %v1422 = vpop.f32.mrb[0].mxu0
        %v1423 = vadd.f32 0.0, %v1422
        %v1424 = vpop.f32.mrb[0].mxu0
        %v1425 = vpop.f32.mrb[0].mxu0
        %v1426 = vadd.f32 0.0, %v1425
        %v1427 = vpop.f32.mrb[0].mxu0
        %1428 = vmatprep.mubr.bf16.mxu0 0
        %1429 = vmatmul.mubr.bf16.gmra.mrb[0].mxu0 %v976
        %v1430 = vpop.f32.mrb[0].mxu0
        %v1431 = vadd.f32 0.0, %v1430
        %v1432 = vpop.f32.mrb[0].mxu0
        %v1433 = vpop.f32.mrb[0].mxu0
        %v1434 = vadd.f32 0.0, %v1433
        %v1435 = vpop.f32.mrb[0].mxu0
        %1436 = vmatprep.mubr.bf16.mxu0 0
        %1437 = vmatmul.mubr.bf16.gmra.mrb[0].mxu0 %v979
        %v1438 = vpop.f32.mrb[0].mxu0
        %v1439 = vadd.f32 0.0, %v1438
        %v1440 = vpop.f32.mrb[0].mxu0
        %v1441 = vpop.f32.mrb[0].mxu0
        %v1442 = vadd.f32 0.0, %v1441
        %v1443 = vpop.f32.mrb[0].mxu0
        %1444 = vmatprep.mubr.bf16.mxu0 0
        %1445 = vmatmul.mubr.bf16.gmra.mrb[0].mxu0 %v982
        %v1446 = vpop.f32.mrb[0].mxu0
        %v1447 = vadd.f32 0.0, %v1446
        %v1448 = vpop.f32.mrb[0].mxu0
        %v1449 = vpop.f32.mrb[0].mxu0
        %v1450 = vadd.f32 0.0, %v1449
        %v1451 = vpop.f32.mrb[0].mxu0
        %1452 = vmatprep.mubr.bf16.mxu0 0
        %1453 = vmatmul.mubr.bf16.gmra.mrb[0].mxu0 %v985
        %v1454 = vpop.f32.mrb[0].mxu0
        %v1455 = vadd.f32 0.0, %v1454
        %v1456 = vpop.f32.mrb[0].mxu0
        %v1457 = vpop.f32.mrb[0].mxu0
        %v1458 = vadd.f32 0.0, %v1457
        %v1459 = vpop.f32.mrb[0].mxu0
        %1460 = vmatprep.mubr.bf16.mxu0 0
        %1461 = vmatmul.mubr.bf16.gmra.mrb[0].mxu0 %v988
        %v1462 = vpop.f32.mrb[0].mxu0
        %v1463 = vadd.f32 0.0, %v1462
        %v1464 = vpop.f32.mrb[0].mxu0
        %v1465 = vpop.f32.mrb[0].mxu0
        %v1466 = vadd.f32 0.0, %v1465
        %v1467 = vpop.f32.mrb[0].mxu0
        %1468 = vmatprep.mubr.bf16.mxu0 0
        %1469 = vmatmul.mubr.bf16.gmra.mrb[0].mxu0 %v991
        %v1470 = vpop.f32.mrb[0].mxu0
        %v1471 = vadd.f32 0.0, %v1470
        %v1472 = vpop.f32.mrb[0].mxu0
        %v1473 = vpop.f32.mrb[0].mxu0
        %v1474 = vadd.f32 0.0, %v1473
        %v1475 = vpop.f32.mrb[0].mxu0
        %1476 = vmatprep.mubr.bf16.mxu0 0
        %1477 = vmatmul.mubr.bf16.gmra.mrb[0].mxu0 %v994
        %v1478 = vpop.f32.mrb[0].mxu0
        %v1479 = vadd.f32 0.0, %v1478
        %v1480 = vpop.f32.mrb[0].mxu0
        %v1481 = vpop.f32.mrb[0].mxu0
        %v1482 = vadd.f32 0.0, %v1481
        %v1483 = vpop.f32.mrb[0].mxu0
        %1484 = vmatprep.mubr.bf16.mxu0 0
        %1485 = vmatmul.mubr.bf16.gmra.mrb[0].mxu0 %v997
        %v1486 = vpop.f32.mrb[0].mxu0
        %v1487 = vadd.f32 0.0, %v1486
        %v1488 = vpop.f32.mrb[0].mxu0
        %v1489 = vpop.f32.mrb[0].mxu0
        %v1490 = vadd.f32 0.0, %v1489
        %v1491 = vpop.f32.mrb[0].mxu0
        %1492 = vmatprep.mubr.bf16.mxu0 0
        %1493 = vmatmul.mubr.bf16.gmra.mrb[0].mxu0 %v1000
        %v1494 = vpop.f32.mrb[0].mxu0
        %v1495 = vadd.f32 0.0, %v1494
        %v1496 = vpop.f32.mrb[0].mxu0
        %v1497 = vpop.f32.mrb[0].mxu0
        %v1498 = vadd.f32 0.0, %v1497
        %v1499 = vpop.f32.mrb[0].mxu0
        %1500 = vmatprep.mubr.bf16.mxu0 0
        %1501 = vmatmul.mubr.bf16.gmra.mrb[0].mxu0 %v1185
        %v1502 = vpop.f32.mrb[0].mxu0
        %v1503 = vadd.f32 0.0, %v1502
        %v1504 = vpop.f32.mrb[0].mxu0
        %v1505 = vpop.f32.mrb[0].mxu0
        %v1506 = vadd.f32 0.0, %v1505
        %v1507 = vpop.f32.mrb[0].mxu0
        %1508 = vmatprep.mubr.bf16.mxu0 0
        %1509 = vmatmul.mubr.bf16.gmra.mrb[0].mxu0 %v1370
        %v1510 = vpop.f32.mrb[0].mxu0
        %v1511 = vadd.f32 0.0, %v1510
        %v1512 = vpop.f32.mrb[0].mxu0
        %v1513 = vpop.f32.mrb[0].mxu0
        %v1514 = vadd.f32 0.0, %v1513
        %v1515 = vpop.f32.mrb[0].mxu0
        %1516 = vdwg.mxu0
        %v1517 = vadd.f32 %v1332, %v1407
        %v1518 = vadd.f32 %v1333, %v1410
        %v1519 = vadd.f32 %v1334, %v1415
        %v1520 = vadd.f32 %v1335, %v1418
        %v1521 = vadd.f32 %v1336, %v1423
        %v1522 = vadd.f32 %v1337, %v1426
        %v1523 = vadd.f32 %v1338, %v1431
        %v1524 = vadd.f32 %v1339, %v1434
        %v1525 = vadd.f32 %v1340, %v1439
        %v1526 = vadd.f32 %v1341, %v1442
        %v1527 = vadd.f32 %v1342, %v1447
        %v1528 = vadd.f32 %v1343, %v1450
        %v1529 = vadd.f32 %v1344, %v1455
        %v1530 = vadd.f32 %v1345, %v1458
        %v1531 = vadd.f32 %v1346, %v1463
        %v1532 = vadd.f32 %v1347, %v1466
        %v1533 = vadd.f32 %v1348, %v1471
        %v1534 = vadd.f32 %v1349, %v1474
        %v1535 = vadd.f32 %v1350, %v1479
        %v1536 = vadd.f32 %v1351, %v1482
        %v1537 = vadd.f32 %v1352, %v1487
        %v1538 = vadd.f32 %v1353, %v1490
        %v1539 = vadd.f32 %v1354, %v1495
        %v1540 = vadd.f32 %v1355, %v1498
        %v1541 = vadd.f32 %v1356, %v1503
        %v1542 = vadd.f32 %v1357, %v1506
        %v1543 = vadd.f32 %v1358, %v1511
        %v1544 = vadd.f32 %v1359, %v1514
        %v1561 = vrot.slane %v250, 1
        %v1562 = vrot.slane %v251, 1
        %v1563 = vrot.slane %v252, 1
        %v1564 = vrot.slane %v253, 1
        %v1565 = vrot.slane %v254, 1
        %v1566 = vrot.slane %v255, 1
        %v1567 = vrot.slane %v256, 1
        %v1568 = vrot.slane %v257, 1
        %v1569 = vrot.slane %v258, 1
        %v1570 = vrot.slane %v259, 1
        %v1571 = vrot.slane %v260, 1
        %v1572 = vrot.slane %v261, 1
        %v1573 = vrot.slane %v262, 1
        %v1574 = vrot.slane %v263, 1
        %v1575 = vrot.slane %v264, 1
        %v1576 = vrot.slane %v265, 1
        %vm1577 = vcmask 1046528
        %v1579 = vsel %vm1577, %v1561, %v1561
        %v1581 = vsel %vm1577, %v1562, %v1562
        %v1583 = vsel %vm1577, %v1563, %v1563
        %v1585 = vsel %vm1577, %v1564, %v1564
        %v1587 = vsel %vm1577, %v1565, %v1565
        %v1589 = vsel %vm1577, %v1566, %v1566
        %v1591 = vsel %vm1577, %v1567, %v1567
        %v1593 = vsel %vm1577, %v1568, %v1568
        %v1595 = vsel %vm1577, %v1569, %v1569
        %v1597 = vsel %vm1577, %v1570, %v1570
        %v1599 = vsel %vm1577, %v1571, %v1571
        %v1601 = vsel %vm1577, %v1572, %v1572
        %v1603 = vsel %vm1577, %v1573, %v1573
        %v1605 = vsel %vm1577, %v1574, %v1574
        %v1607 = vsel %vm1577, %v1575, %v1575
        %v1609 = vsel %vm1577, %v1576, %v1576
        %s1610 = scalar_lea.vmem [#allocation5], 16
        %v1611 = vld [vmem:[%s1610] sm:$0xf]
        %v1612 = vld [vmem:[%s1610 + $0x4] sm:$0xf]
        %v1615 = vunpack.c.l.b16 %v1611
        %v1616 = vunpack.c.l.b16 %v1612
        %v1617 = vpack.c.b16 %v1616, %v1615
        %v1619 = vsel %vm277, %v1579, 0
        %v1621 = vsel %vm277, %v1581, 0
        %v1623 = vsel %vm277, %v1583, 0
        %v1625 = vsel %vm277, %v1585, 0
        %v1627 = vsel %vm277, %v1587, 0
        %v1629 = vsel %vm277, %v1589, 0
        %v1631 = vsel %vm277, %v1591, 0
        %v1633 = vsel %vm277, %v1593, 0
        %v1635 = vsel %vm277, %v1595, 0
        %v1637 = vsel %vm277, %v1597, 0
        %v1639 = vsel %vm277, %v1599, 0
        %v1641 = vsel %vm277, %v1601, 0
        %v1643 = vsel %vm277, %v1603, 0
        %v1645 = vsel %vm277, %v1605, 0
        %1647 = vmatprep.subr.bf16.mxu0 0
        %1648 = vmatpush1.bf16.msra.mxu0 %v1617
        %1649 = vmatprep.subr.bf16.mxu0 0
        %1650 = vmatpush1.bf16.msra.mxu0 0
        %1651 = vmatprep.subr.bf16.mxu0 0
        %1652 = vmatpush1.bf16.msra.mxu0 0
        %1653 = vmatprep.subr.bf16.mxu0 0
        %1654 = vmatpush1.bf16.msra.mxu0 0
        %1655 = vmatprep.subr.bf16.mxu0 0
        %1656 = vmatpush1.bf16.msra.mxu0 0
        %1657 = vmatprep.subr.bf16.mxu0 0
        %1658 = vmatpush1.bf16.msra.mxu0 0
        %1659 = vmatprep.subr.bf16.mxu0 0
        %1660 = vmatpush1.bf16.msra.mxu0 0
        %1661 = vmatprep.subr.bf16.mxu0 0
        %1662 = vmatpush1.bf16.msra.mxu0 0
        %1663 = vmatprep.subr.bf16.mxu0 0
        %1664 = vmatpush1.bf16.msra.mxu0 0
        %1665 = vmatprep.subr.bf16.mxu0 0
        %1666 = vmatpush1.bf16.msra.mxu0 0
        %1667 = vmatprep.subr.bf16.mxu0 0
        %1668 = vmatpush1.bf16.msra.mxu0 0
        %1669 = vmatprep.subr.bf16.mxu0 0
        %1670 = vmatpush1.bf16.msra.mxu0 0
        %1671 = vmatprep.subr.bf16.mxu0 0
        %1672 = vmatpush1.bf16.msra.mxu0 0
        %1673 = vmatprep.subr.bf16.mxu0 0
        %1674 = vmatpush1.bf16.msra.mxu0 0
        %1675 = vmatprep.subr.bf16.mxu0 0
        %1676 = vmatpush1.bf16.msra.mxu0 0
        %1677 = vmatprep.subr.bf16.mxu0 0
        %1678 = vmatpush1.bf16.msra.mxu0 0
        %1679 = vmatprep.mubr.bf16.mxu0 0
        %1680 = vmatmul.mubr.bf16.gmra.mrb[0].mxu0 %v1619
        %v1681 = vpop.f32.mrb[0].mxu0
        %v1682 = vadd.f32 0.0, %v1681
        %v1683 = vpop.f32.mrb[0].mxu0
        %v1684 = vpop.f32.mrb[0].mxu0
        %v1685 = vadd.f32 0.0, %v1684
        %v1686 = vpop.f32.mrb[0].mxu0
        %1687 = vmatprep.mubr.bf16.mxu0 0
        %1688 = vmatmul.mubr.bf16.gmra.mrb[0].mxu0 %v1621
        %v1689 = vpop.f32.mrb[0].mxu0
        %v1690 = vadd.f32 0.0, %v1689
        %v1691 = vpop.f32.mrb[0].mxu0
        %v1692 = vpop.f32.mrb[0].mxu0
        %v1693 = vadd.f32 0.0, %v1692
        %v1694 = vpop.f32.mrb[0].mxu0
        %1695 = vmatprep.mubr.bf16.mxu0 0
        %1696 = vmatmul.mubr.bf16.gmra.mrb[0].mxu0 %v1623
        %v1697 = vpop.f32.mrb[0].mxu0
        %v1698 = vadd.f32 0.0, %v1697
        %v1699 = vpop.f32.mrb[0].mxu0
        %v1700 = vpop.f32.mrb[0].mxu0
        %v1701 = vadd.f32 0.0, %v1700
        %v1702 = vpop.f32.mrb[0].mxu0
        %1703 = vmatprep.mubr.bf16.mxu0 0
        %1704 = vmatmul.mubr.bf16.gmra.mrb[0].mxu0 %v1625
        %v1705 = vpop.f32.mrb[0].mxu0
        %v1706 = vadd.f32 0.0, %v1705
        %v1707 = vpop.f32.mrb[0].mxu0
        %v1708 = vpop.f32.mrb[0].mxu0
        %v1709 = vadd.f32 0.0, %v1708
        %v1710 = vpop.f32.mrb[0].mxu0
        %1711 = vmatprep.mubr.bf16.mxu0 0
        %1712 = vmatmul.mubr.bf16.gmra.mrb[0].mxu0 %v1627
        %v1713 = vpop.f32.mrb[0].mxu0
        %v1714 = vadd.f32 0.0, %v1713
        %v1715 = vpop.f32.mrb[0].mxu0
        %v1716 = vpop.f32.mrb[0].mxu0
        %v1717 = vadd.f32 0.0, %v1716
        %v1718 = vpop.f32.mrb[0].mxu0
        %1719 = vmatprep.mubr.bf16.mxu0 0
        %1720 = vmatmul.mubr.bf16.gmra.mrb[0].mxu0 %v1629
        %v1721 = vpop.f32.mrb[0].mxu0
        %v1722 = vadd.f32 0.0, %v1721
        %v1723 = vpop.f32.mrb[0].mxu0
        %v1724 = vpop.f32.mrb[0].mxu0
        %v1725 = vadd.f32 0.0, %v1724
        %v1726 = vpop.f32.mrb[0].mxu0
        %1727 = vmatprep.mubr.bf16.mxu0 0
        %1728 = vmatmul.mubr.bf16.gmra.mrb[0].mxu0 %v1631
        %v1729 = vpop.f32.mrb[0].mxu0
        %v1730 = vadd.f32 0.0, %v1729
        %v1731 = vpop.f32.mrb[0].mxu0
        %v1732 = vpop.f32.mrb[0].mxu0
        %v1733 = vadd.f32 0.0, %v1732
        %v1734 = vpop.f32.mrb[0].mxu0
        %1735 = vmatprep.mubr.bf16.mxu0 0
        %1736 = vmatmul.mubr.bf16.gmra.mrb[0].mxu0 %v1633
        %v1737 = vpop.f32.mrb[0].mxu0
        %v1738 = vadd.f32 0.0, %v1737
        %v1739 = vpop.f32.mrb[0].mxu0
        %v1740 = vpop.f32.mrb[0].mxu0
        %v1741 = vadd.f32 0.0, %v1740
        %v1742 = vpop.f32.mrb[0].mxu0
        %1743 = vmatprep.mubr.bf16.mxu0 0
        %1744 = vmatmul.mubr.bf16.gmra.mrb[0].mxu0 %v1635
        %v1745 = vpop.f32.mrb[0].mxu0
        %v1746 = vadd.f32 0.0, %v1745
        %v1747 = vpop.f32.mrb[0].mxu0
        %v1748 = vpop.f32.mrb[0].mxu0
        %v1749 = vadd.f32 0.0, %v1748
        %v1750 = vpop.f32.mrb[0].mxu0
        %1751 = vmatprep.mubr.bf16.mxu0 0
        %1752 = vmatmul.mubr.bf16.gmra.mrb[0].mxu0 %v1637
        %v1753 = vpop.f32.mrb[0].mxu0
        %v1754 = vadd.f32 0.0, %v1753
        %v1755 = vpop.f32.mrb[0].mxu0
        %v1756 = vpop.f32.mrb[0].mxu0
        %v1757 = vadd.f32 0.0, %v1756
        %v1758 = vpop.f32.mrb[0].mxu0
        %1759 = vmatprep.mubr.bf16.mxu0 0
        %1760 = vmatmul.mubr.bf16.gmra.mrb[0].mxu0 %v1639
        %v1761 = vpop.f32.mrb[0].mxu0
        %v1762 = vadd.f32 0.0, %v1761
        %v1763 = vpop.f32.mrb[0].mxu0
        %v1764 = vpop.f32.mrb[0].mxu0
        %v1765 = vadd.f32 0.0, %v1764
        %v1766 = vpop.f32.mrb[0].mxu0
        %1767 = vmatprep.mubr.bf16.mxu0 0
        %1768 = vmatmul.mubr.bf16.gmra.mrb[0].mxu0 %v1641
        %v1769 = vpop.f32.mrb[0].mxu0
        %v1770 = vadd.f32 0.0, %v1769
        %v1771 = vpop.f32.mrb[0].mxu0
        %v1772 = vpop.f32.mrb[0].mxu0
        %v1773 = vadd.f32 0.0, %v1772
        %v1774 = vpop.f32.mrb[0].mxu0
        %1775 = vmatprep.mubr.bf16.mxu0 0
        %1776 = vmatmul.mubr.bf16.gmra.mrb[0].mxu0 %v1643
        %v1777 = vpop.f32.mrb[0].mxu0
        %v1778 = vadd.f32 0.0, %v1777
        %v1779 = vpop.f32.mrb[0].mxu0
        %v1780 = vpop.f32.mrb[0].mxu0
        %v1781 = vadd.f32 0.0, %v1780
        %v1782 = vpop.f32.mrb[0].mxu0
        %1783 = vmatprep.mubr.bf16.mxu0 0
        %1784 = vmatmul.mubr.bf16.gmra.mrb[0].mxu0 %v1645
        %v1785 = vpop.f32.mrb[0].mxu0
        %v1786 = vadd.f32 0.0, %v1785
        %v1787 = vpop.f32.mrb[0].mxu0
        %v1788 = vpop.f32.mrb[0].mxu0
        %v1789 = vadd.f32 0.0, %v1788
        %v1790 = vpop.f32.mrb[0].mxu0
        %1791 = vdwg.mxu0
        %v1792 = vadd.f32 %v1517, %v1682
        %v1793 = vadd.f32 %v1518, %v1685
        %v1794 = vadd.f32 %v1519, %v1690
        %v1795 = vadd.f32 %v1520, %v1693
        %v1796 = vadd.f32 %v1521, %v1698
        %v1797 = vadd.f32 %v1522, %v1701
        %v1798 = vadd.f32 %v1523, %v1706
        %v1799 = vadd.f32 %v1524, %v1709
        %v1800 = vadd.f32 %v1525, %v1714
        %v1801 = vadd.f32 %v1526, %v1717
        %v1802 = vadd.f32 %v1527, %v1722
        %v1803 = vadd.f32 %v1528, %v1725
        %v1804 = vadd.f32 %v1529, %v1730
        %v1805 = vadd.f32 %v1530, %v1733
        %v1806 = vadd.f32 %v1531, %v1738
        %v1807 = vadd.f32 %v1532, %v1741
        %v1808 = vadd.f32 %v1533, %v1746
        %v1809 = vadd.f32 %v1534, %v1749
        %v1810 = vadd.f32 %v1535, %v1754
        %v1811 = vadd.f32 %v1536, %v1757
        %v1812 = vadd.f32 %v1537, %v1762
        %v1813 = vadd.f32 %v1538, %v1765
        %v1814 = vadd.f32 %v1539, %v1770
        %v1815 = vadd.f32 %v1540, %v1773
        %v1816 = vadd.f32 %v1541, %v1778
        %v1817 = vadd.f32 %v1542, %v1781
        %v1818 = vadd.f32 %v1543, %v1786
        %v1819 = vadd.f32 %v1544, %v1789
        %s1820 = scalar_lea.vmem [#allocation5], 40
        %v1821 = vld [vmem:[%s1820] sm:$0xf]
        %v1822 = vld [vmem:[%s1820 + $0x4] sm:$0xf]
        %v1825 = vunpack.c.l.b16 %v1821
        %v1826 = vunpack.c.l.b16 %v1822
        %v1827 = vpack.c.b16 %v1826, %v1825
        %v1829 = vsel %vm277, %v1607, 0
        %1831 = vmatprep.subr.bf16.mxu0 0
        %1832 = vmatpush1.bf16.msra.mxu0 %v1827
        %1833 = vmatprep.subr.bf16.mxu0 0
        %1834 = vmatpush1.bf16.msra.mxu0 0
        %1835 = vmatprep.subr.bf16.mxu0 0
        %1836 = vmatpush1.bf16.msra.mxu0 0
        %1837 = vmatprep.subr.bf16.mxu0 0
        %1838 = vmatpush1.bf16.msra.mxu0 0
        %1839 = vmatprep.subr.bf16.mxu0 0
        %1840 = vmatpush1.bf16.msra.mxu0 0
        %1841 = vmatprep.subr.bf16.mxu0 0
        %1842 = vmatpush1.bf16.msra.mxu0 0
        %1843 = vmatprep.subr.bf16.mxu0 0
        %1844 = vmatpush1.bf16.msra.mxu0 0
        %1845 = vmatprep.subr.bf16.mxu0 0
        %1846 = vmatpush1.bf16.msra.mxu0 0
        %1847 = vmatprep.subr.bf16.mxu0 0
        %1848 = vmatpush1.bf16.msra.mxu0 0
        %1849 = vmatprep.subr.bf16.mxu0 0
        %1850 = vmatpush1.bf16.msra.mxu0 0
        %1851 = vmatprep.subr.bf16.mxu0 0
        %1852 = vmatpush1.bf16.msra.mxu0 0
        %1853 = vmatprep.subr.bf16.mxu0 0
        %1854 = vmatpush1.bf16.msra.mxu0 0
        %1855 = vmatprep.subr.bf16.mxu0 0
        %1856 = vmatpush1.bf16.msra.mxu0 0
        %1857 = vmatprep.subr.bf16.mxu0 0
        %1858 = vmatpush1.bf16.msra.mxu0 0
        %1859 = vmatprep.subr.bf16.mxu0 0
        %1860 = vmatpush1.bf16.msra.mxu0 0
        %1861 = vmatprep.subr.bf16.mxu0 0
        %1862 = vmatpush1.bf16.msra.mxu0 0
        %1863 = vmatprep.mubr.bf16.mxu0 0
        %1864 = vmatmul.mubr.bf16.gmra.mrb[0].mxu0 %v1621
        %v1865 = vpop.f32.mrb[0].mxu0
        %v1866 = vadd.f32 0.0, %v1865
        %v1867 = vpop.f32.mrb[0].mxu0
        %v1868 = vpop.f32.mrb[0].mxu0
        %v1869 = vadd.f32 0.0, %v1868
        %v1870 = vpop.f32.mrb[0].mxu0
        %1871 = vmatprep.mubr.bf16.mxu0 0
        %1872 = vmatmul.mubr.bf16.gmra.mrb[0].mxu0 %v1623
        %v1873 = vpop.f32.mrb[0].mxu0
        %v1874 = vadd.f32 0.0, %v1873
        %v1875 = vpop.f32.mrb[0].mxu0
        %v1876 = vpop.f32.mrb[0].mxu0
        %v1877 = vadd.f32 0.0, %v1876
        %v1878 = vpop.f32.mrb[0].mxu0
        %1879 = vmatprep.mubr.bf16.mxu0 0
        %1880 = vmatmul.mubr.bf16.gmra.mrb[0].mxu0 %v1625
        %v1881 = vpop.f32.mrb[0].mxu0
        %v1882 = vadd.f32 0.0, %v1881
        %v1883 = vpop.f32.mrb[0].mxu0
        %v1884 = vpop.f32.mrb[0].mxu0
        %v1885 = vadd.f32 0.0, %v1884
        %v1886 = vpop.f32.mrb[0].mxu0
        %1887 = vmatprep.mubr.bf16.mxu0 0
        %1888 = vmatmul.mubr.bf16.gmra.mrb[0].mxu0 %v1627
        %v1889 = vpop.f32.mrb[0].mxu0
        %v1890 = vadd.f32 0.0, %v1889
        %v1891 = vpop.f32.mrb[0].mxu0
        %v1892 = vpop.f32.mrb[0].mxu0
        %v1893 = vadd.f32 0.0, %v1892
        %v1894 = vpop.f32.mrb[0].mxu0
        %1895 = vmatprep.mubr.bf16.mxu0 0
        %1896 = vmatmul.mubr.bf16.gmra.mrb[0].mxu0 %v1629
        %v1897 = vpop.f32.mrb[0].mxu0
        %v1898 = vadd.f32 0.0, %v1897
        %v1899 = vpop.f32.mrb[0].mxu0
        %v1900 = vpop.f32.mrb[0].mxu0
        %v1901 = vadd.f32 0.0, %v1900
        %v1902 = vpop.f32.mrb[0].mxu0
        %1903 = vmatprep.mubr.bf16.mxu0 0
        %1904 = vmatmul.mubr.bf16.gmra.mrb[0].mxu0 %v1631
        %v1905 = vpop.f32.mrb[0].mxu0
        %v1906 = vadd.f32 0.0, %v1905
        %v1907 = vpop.f32.mrb[0].mxu0
        %v1908 = vpop.f32.mrb[0].mxu0
        %v1909 = vadd.f32 0.0, %v1908
        %v1910 = vpop.f32.mrb[0].mxu0
        %1911 = vmatprep.mubr.bf16.mxu0 0
        %1912 = vmatmul.mubr.bf16.gmra.mrb[0].mxu0 %v1633
        %v1913 = vpop.f32.mrb[0].mxu0
        %v1914 = vadd.f32 0.0, %v1913
        %v1915 = vpop.f32.mrb[0].mxu0
        %v1916 = vpop.f32.mrb[0].mxu0
        %v1917 = vadd.f32 0.0, %v1916
        %v1918 = vpop.f32.mrb[0].mxu0
        %1919 = vmatprep.mubr.bf16.mxu0 0
        %1920 = vmatmul.mubr.bf16.gmra.mrb[0].mxu0 %v1635
        %v1921 = vpop.f32.mrb[0].mxu0
        %v1922 = vadd.f32 0.0, %v1921
        %v1923 = vpop.f32.mrb[0].mxu0
        %v1924 = vpop.f32.mrb[0].mxu0
        %v1925 = vadd.f32 0.0, %v1924
        %v1926 = vpop.f32.mrb[0].mxu0
        %1927 = vmatprep.mubr.bf16.mxu0 0
        %1928 = vmatmul.mubr.bf16.gmra.mrb[0].mxu0 %v1637
        %v1929 = vpop.f32.mrb[0].mxu0
        %v1930 = vadd.f32 0.0, %v1929
        %v1931 = vpop.f32.mrb[0].mxu0
        %v1932 = vpop.f32.mrb[0].mxu0
        %v1933 = vadd.f32 0.0, %v1932
        %v1934 = vpop.f32.mrb[0].mxu0
        %1935 = vmatprep.mubr.bf16.mxu0 0
        %1936 = vmatmul.mubr.bf16.gmra.mrb[0].mxu0 %v1639
        %v1937 = vpop.f32.mrb[0].mxu0
        %v1938 = vadd.f32 0.0, %v1937
        %v1939 = vpop.f32.mrb[0].mxu0
        %v1940 = vpop.f32.mrb[0].mxu0
        %v1941 = vadd.f32 0.0, %v1940
        %v1942 = vpop.f32.mrb[0].mxu0
        %1943 = vmatprep.mubr.bf16.mxu0 0
        %1944 = vmatmul.mubr.bf16.gmra.mrb[0].mxu0 %v1641
        %v1945 = vpop.f32.mrb[0].mxu0
        %v1946 = vadd.f32 0.0, %v1945
        %v1947 = vpop.f32.mrb[0].mxu0
        %v1948 = vpop.f32.mrb[0].mxu0
        %v1949 = vadd.f32 0.0, %v1948
        %v1950 = vpop.f32.mrb[0].mxu0
        %1951 = vmatprep.mubr.bf16.mxu0 0
        %1952 = vmatmul.mubr.bf16.gmra.mrb[0].mxu0 %v1643
        %v1953 = vpop.f32.mrb[0].mxu0
        %v1954 = vadd.f32 0.0, %v1953
        %v1955 = vpop.f32.mrb[0].mxu0
        %v1956 = vpop.f32.mrb[0].mxu0
        %v1957 = vadd.f32 0.0, %v1956
        %v1958 = vpop.f32.mrb[0].mxu0
        %1959 = vmatprep.mubr.bf16.mxu0 0
        %1960 = vmatmul.mubr.bf16.gmra.mrb[0].mxu0 %v1645
        %v1961 = vpop.f32.mrb[0].mxu0
        %v1962 = vadd.f32 0.0, %v1961
        %v1963 = vpop.f32.mrb[0].mxu0
        %v1964 = vpop.f32.mrb[0].mxu0
        %v1965 = vadd.f32 0.0, %v1964
        %v1966 = vpop.f32.mrb[0].mxu0
        %1967 = vmatprep.mubr.bf16.mxu0 0
        %1968 = vmatmul.mubr.bf16.gmra.mrb[0].mxu0 %v1829
        %v1969 = vpop.f32.mrb[0].mxu0
        %v1970 = vadd.f32 0.0, %v1969
        %v1971 = vpop.f32.mrb[0].mxu0
        %v1972 = vpop.f32.mrb[0].mxu0
        %v1973 = vadd.f32 0.0, %v1972
        %v1974 = vpop.f32.mrb[0].mxu0
        %1975 = vdwg.mxu0
        %v1976 = vadd.f32 %v1792, %v1866
        %v1977 = vadd.f32 %v1793, %v1869
        %v1978 = vadd.f32 %v1794, %v1874
        %v1979 = vadd.f32 %v1795, %v1877
        %v1980 = vadd.f32 %v1796, %v1882
        %v1981 = vadd.f32 %v1797, %v1885
        %v1982 = vadd.f32 %v1798, %v1890
        %v1983 = vadd.f32 %v1799, %v1893
        %v1984 = vadd.f32 %v1800, %v1898
        %v1985 = vadd.f32 %v1801, %v1901
        %v1986 = vadd.f32 %v1802, %v1906
        %v1987 = vadd.f32 %v1803, %v1909
        %v1988 = vadd.f32 %v1804, %v1914
        %v1989 = vadd.f32 %v1805, %v1917
        %v1990 = vadd.f32 %v1806, %v1922
        %v1991 = vadd.f32 %v1807, %v1925
        %v1992 = vadd.f32 %v1808, %v1930
        %v1993 = vadd.f32 %v1809, %v1933
        %v1994 = vadd.f32 %v1810, %v1938
        %v1995 = vadd.f32 %v1811, %v1941
        %v1996 = vadd.f32 %v1812, %v1946
        %v1997 = vadd.f32 %v1813, %v1949
        %v1998 = vadd.f32 %v1814, %v1954
        %v1999 = vadd.f32 %v1815, %v1957
        %v2000 = vadd.f32 %v1816, %v1962
        %v2001 = vadd.f32 %v1817, %v1965
        %v2002 = vadd.f32 %v1818, %v1970
        %v2003 = vadd.f32 %v1819, %v1973
        %s2004 = scalar_lea.vmem [#allocation5], 64
        %v2005 = vld [vmem:[%s2004] sm:$0xf]
        %v2006 = vld [vmem:[%s2004 + $0x4] sm:$0xf]
        %v2009 = vunpack.c.l.b16 %v2005
        %v2010 = vunpack.c.l.b16 %v2006
        %v2011 = vpack.c.b16 %v2010, %v2009
        %v2013 = vsel %vm277, %v1609, 0
        %2015 = vmatprep.subr.bf16.mxu0 0
        %2016 = vmatpush1.bf16.msra.mxu0 %v2011
        %2017 = vmatprep.subr.bf16.mxu0 0
        %2018 = vmatpush1.bf16.msra.mxu0 0
        %2019 = vmatprep.subr.bf16.mxu0 0
        %2020 = vmatpush1.bf16.msra.mxu0 0
        %2021 = vmatprep.subr.bf16.mxu0 0
        %2022 = vmatpush1.bf16.msra.mxu0 0
        %2023 = vmatprep.subr.bf16.mxu0 0
        %2024 = vmatpush1.bf16.msra.mxu0 0
        %2025 = vmatprep.subr.bf16.mxu0 0
        %2026 = vmatpush1.bf16.msra.mxu0 0
        %2027 = vmatprep.subr.bf16.mxu0 0
        %2028 = vmatpush1.bf16.msra.mxu0 0
        %2029 = vmatprep.subr.bf16.mxu0 0
        %2030 = vmatpush1.bf16.msra.mxu0 0
        %2031 = vmatprep.subr.bf16.mxu0 0
        %2032 = vmatpush1.bf16.msra.mxu0 0
        %2033 = vmatprep.subr.bf16.mxu0 0
        %2034 = vmatpush1.bf16.msra.mxu0 0
        %2035 = vmatprep.subr.bf16.mxu0 0
        %2036 = vmatpush1.bf16.msra.mxu0 0
        %2037 = vmatprep.subr.bf16.mxu0 0
        %2038 = vmatpush1.bf16.msra.mxu0 0
        %2039 = vmatprep.subr.bf16.mxu0 0
        %2040 = vmatpush1.bf16.msra.mxu0 0
        %2041 = vmatprep.subr.bf16.mxu0 0
        %2042 = vmatpush1.bf16.msra.mxu0 0
        %2043 = vmatprep.subr.bf16.mxu0 0
        %2044 = vmatpush1.bf16.msra.mxu0 0
        %2045 = vmatprep.subr.bf16.mxu0 0
        %2046 = vmatpush1.bf16.msra.mxu0 0
        %2047 = vmatprep.mubr.bf16.mxu0 0
        %2048 = vmatmul.mubr.bf16.gmra.mrb[0].mxu0 %v1623
        %v2049 = vpop.f32.mrb[0].mxu0
        %v2050 = vadd.f32 0.0, %v2049
        %v2051 = vpop.f32.mrb[0].mxu0
        %v2052 = vpop.f32.mrb[0].mxu0
        %v2053 = vadd.f32 0.0, %v2052
        %v2054 = vpop.f32.mrb[0].mxu0
        %2055 = vmatprep.mubr.bf16.mxu0 0
        %2056 = vmatmul.mubr.bf16.gmra.mrb[0].mxu0 %v1625
        %v2057 = vpop.f32.mrb[0].mxu0
        %v2058 = vadd.f32 0.0, %v2057
        %v2059 = vpop.f32.mrb[0].mxu0
        %v2060 = vpop.f32.mrb[0].mxu0
        %v2061 = vadd.f32 0.0, %v2060
        %v2062 = vpop.f32.mrb[0].mxu0
        %2063 = vmatprep.mubr.bf16.mxu0 0
        %2064 = vmatmul.mubr.bf16.gmra.mrb[0].mxu0 %v1627
        %v2065 = vpop.f32.mrb[0].mxu0
        %v2066 = vadd.f32 0.0, %v2065
        %v2067 = vpop.f32.mrb[0].mxu0
        %v2068 = vpop.f32.mrb[0].mxu0
        %v2069 = vadd.f32 0.0, %v2068
        %v2070 = vpop.f32.mrb[0].mxu0
        %2071 = vmatprep.mubr.bf16.mxu0 0
        %2072 = vmatmul.mubr.bf16.gmra.mrb[0].mxu0 %v1629
        %v2073 = vpop.f32.mrb[0].mxu0
        %v2074 = vadd.f32 0.0, %v2073
        %v2075 = vpop.f32.mrb[0].mxu0
        %v2076 = vpop.f32.mrb[0].mxu0
        %v2077 = vadd.f32 0.0, %v2076
        %v2078 = vpop.f32.mrb[0].mxu0
        %2079 = vmatprep.mubr.bf16.mxu0 0
        %2080 = vmatmul.mubr.bf16.gmra.mrb[0].mxu0 %v1631
        %v2081 = vpop.f32.mrb[0].mxu0
        %v2082 = vadd.f32 0.0, %v2081
        %v2083 = vpop.f32.mrb[0].mxu0
        %v2084 = vpop.f32.mrb[0].mxu0
        %v2085 = vadd.f32 0.0, %v2084
        %v2086 = vpop.f32.mrb[0].mxu0
        %2087 = vmatprep.mubr.bf16.mxu0 0
        %2088 = vmatmul.mubr.bf16.gmra.mrb[0].mxu0 %v1633
        %v2089 = vpop.f32.mrb[0].mxu0
        %v2090 = vadd.f32 0.0, %v2089
        %v2091 = vpop.f32.mrb[0].mxu0
        %v2092 = vpop.f32.mrb[0].mxu0
        %v2093 = vadd.f32 0.0, %v2092
        %v2094 = vpop.f32.mrb[0].mxu0
        %2095 = vmatprep.mubr.bf16.mxu0 0
        %2096 = vmatmul.mubr.bf16.gmra.mrb[0].mxu0 %v1635
        %v2097 = vpop.f32.mrb[0].mxu0
        %v2098 = vadd.f32 0.0, %v2097
        %v2099 = vpop.f32.mrb[0].mxu0
        %v2100 = vpop.f32.mrb[0].mxu0
        %v2101 = vadd.f32 0.0, %v2100
        %v2102 = vpop.f32.mrb[0].mxu0
        %2103 = vmatprep.mubr.bf16.mxu0 0
        %2104 = vmatmul.mubr.bf16.gmra.mrb[0].mxu0 %v1637
        %v2105 = vpop.f32.mrb[0].mxu0
        %v2106 = vadd.f32 0.0, %v2105
        %v2107 = vpop.f32.mrb[0].mxu0
        %v2108 = vpop.f32.mrb[0].mxu0
        %v2109 = vadd.f32 0.0, %v2108
        %v2110 = vpop.f32.mrb[0].mxu0
        %2111 = vmatprep.mubr.bf16.mxu0 0
        %2112 = vmatmul.mubr.bf16.gmra.mrb[0].mxu0 %v1639
        %v2113 = vpop.f32.mrb[0].mxu0
        %v2114 = vadd.f32 0.0, %v2113
        %v2115 = vpop.f32.mrb[0].mxu0
        %v2116 = vpop.f32.mrb[0].mxu0
        %v2117 = vadd.f32 0.0, %v2116
        %v2118 = vpop.f32.mrb[0].mxu0
        %2119 = vmatprep.mubr.bf16.mxu0 0
        %2120 = vmatmul.mubr.bf16.gmra.mrb[0].mxu0 %v1641
        %v2121 = vpop.f32.mrb[0].mxu0
        %v2122 = vadd.f32 0.0, %v2121
        %v2123 = vpop.f32.mrb[0].mxu0
        %v2124 = vpop.f32.mrb[0].mxu0
        %v2125 = vadd.f32 0.0, %v2124
        %v2126 = vpop.f32.mrb[0].mxu0
        %2127 = vmatprep.mubr.bf16.mxu0 0
        %2128 = vmatmul.mubr.bf16.gmra.mrb[0].mxu0 %v1643
        %v2129 = vpop.f32.mrb[0].mxu0
        %v2130 = vadd.f32 0.0, %v2129
        %v2131 = vpop.f32.mrb[0].mxu0
        %v2132 = vpop.f32.mrb[0].mxu0
        %v2133 = vadd.f32 0.0, %v2132
        %v2134 = vpop.f32.mrb[0].mxu0
        %2135 = vmatprep.mubr.bf16.mxu0 0
        %2136 = vmatmul.mubr.bf16.gmra.mrb[0].mxu0 %v1645
        %v2137 = vpop.f32.mrb[0].mxu0
        %v2138 = vadd.f32 0.0, %v2137
        %v2139 = vpop.f32.mrb[0].mxu0
        %v2140 = vpop.f32.mrb[0].mxu0
        %v2141 = vadd.f32 0.0, %v2140
        %v2142 = vpop.f32.mrb[0].mxu0
        %2143 = vmatprep.mubr.bf16.mxu0 0
        %2144 = vmatmul.mubr.bf16.gmra.mrb[0].mxu0 %v1829
        %v2145 = vpop.f32.mrb[0].mxu0
        %v2146 = vadd.f32 0.0, %v2145
        %v2147 = vpop.f32.mrb[0].mxu0
        %v2148 = vpop.f32.mrb[0].mxu0
        %v2149 = vadd.f32 0.0, %v2148
        %v2150 = vpop.f32.mrb[0].mxu0
        %2151 = vmatprep.mubr.bf16.mxu0 0
        %2152 = vmatmul.mubr.bf16.gmra.mrb[0].mxu0 %v2013
        %v2153 = vpop.f32.mrb[0].mxu0
        %v2154 = vadd.f32 0.0, %v2153
        %v2155 = vpop.f32.mrb[0].mxu0
        %v2156 = vpop.f32.mrb[0].mxu0
        %v2157 = vadd.f32 0.0, %v2156
        %v2158 = vpop.f32.mrb[0].mxu0
        %2159 = vdwg.mxu0
        %v2160 = vadd.f32 %v1976, %v2050
        %v2161 = vadd.f32 %v1977, %v2053
        %v2162 = vadd.f32 %v1978, %v2058
        %v2163 = vadd.f32 %v1979, %v2061
        %v2164 = vadd.f32 %v1980, %v2066
        %v2165 = vadd.f32 %v1981, %v2069
        %v2166 = vadd.f32 %v1982, %v2074
        %v2167 = vadd.f32 %v1983, %v2077
        %v2168 = vadd.f32 %v1984, %v2082
        %v2169 = vadd.f32 %v1985, %v2085
        %v2170 = vadd.f32 %v1986, %v2090
        %v2171 = vadd.f32 %v1987, %v2093
        %v2172 = vadd.f32 %v1988, %v2098
        %v2173 = vadd.f32 %v1989, %v2101
        %v2174 = vadd.f32 %v1990, %v2106
        %v2175 = vadd.f32 %v1991, %v2109
        %v2176 = vadd.f32 %v1992, %v2114
        %v2177 = vadd.f32 %v1993, %v2117
        %v2178 = vadd.f32 %v1994, %v2122
        %v2179 = vadd.f32 %v1995, %v2125
        %v2180 = vadd.f32 %v1996, %v2130
        %v2181 = vadd.f32 %v1997, %v2133
        %v2182 = vadd.f32 %v1998, %v2138
        %v2183 = vadd.f32 %v1999, %v2141
        %v2184 = vadd.f32 %v2000, %v2146
        %v2185 = vadd.f32 %v2001, %v2149
        %v2186 = vadd.f32 %v2002, %v2154
        %v2187 = vadd.f32 %v2003, %v2157
        %v2189 = vlaneseq
        %v2190 = vshrl.u32 %v2189, 7
        %v2191 = vsub.s32 0, %v2190
        %v2192 = vrot.slane %v217, %v2191
        %v2194 = vadd.f32 %v2160, %v2192
        %v2195 = vadd.f32 %v2161, %v2192
        %v2196 = vadd.f32 %v2162, %v2192
        %v2197 = vadd.f32 %v2163, %v2192
        %v2198 = vadd.f32 %v2164, %v2192
        %v2199 = vadd.f32 %v2165, %v2192
        %v2200 = vadd.f32 %v2166, %v2192
        %v2201 = vadd.f32 %v2167, %v2192
        %v2202 = vadd.f32 %v2168, %v2192
        %v2203 = vadd.f32 %v2169, %v2192
        %v2204 = vadd.f32 %v2170, %v2192
        %v2205 = vadd.f32 %v2171, %v2192
        %v2206 = vadd.f32 %v2172, %v2192
        %v2207 = vadd.f32 %v2173, %v2192
        %v2208 = vadd.f32 %v2174, %v2192
        %v2209 = vadd.f32 %v2175, %v2192
        %v2210 = vadd.f32 %v2176, %v2192
        %v2211 = vadd.f32 %v2177, %v2192
        %v2212 = vadd.f32 %v2178, %v2192
        %v2213 = vadd.f32 %v2179, %v2192
        %v2214 = vadd.f32 %v2180, %v2192
        %v2215 = vadd.f32 %v2181, %v2192
        %v2216 = vadd.f32 %v2182, %v2192
        %v2217 = vadd.f32 %v2183, %v2192
        %v2218 = vadd.f32 %v2184, %v2192
        %v2219 = vadd.f32 %v2185, %v2192
        %v2220 = vadd.f32 %v2186, %v2192
        %v2221 = vadd.f32 %v2187, %v2192
        %2222 = vst.msk [vmem:[%s215] sm:$0xff] %vm277, %v2194
        %vm2223 = vcmask 128000
        %2224 = vst.msk [vmem:[%s215 + $0x8] sm:$0x3f] %vm2223, %v2195
        %2225 = vst.msk [vmem:[%s215 + $0x10] sm:$0xff] %vm277, %v2196
        %2226 = vst.msk [vmem:[%s215 + $0x18] sm:$0x3f] %vm2223, %v2197
        %2227 = vst.msk [vmem:[%s215 + $0x20] sm:$0xff] %vm277, %v2198
        %2228 = vst.msk [vmem:[%s215 + $0x28] sm:$0x3f] %vm2223, %v2199
        %2229 = vst.msk [vmem:[%s215 + $0x30] sm:$0xff] %vm277, %v2200
        %2230 = vst.msk [vmem:[%s215 + $0x38] sm:$0x3f] %vm2223, %v2201
        %2231 = vst.msk [vmem:[%s215 + $0x40] sm:$0xff] %vm277, %v2202
        %2232 = vst.msk [vmem:[%s215 + $0x48] sm:$0x3f] %vm2223, %v2203
        %2233 = vst.msk [vmem:[%s215 + $0x50] sm:$0xff] %vm277, %v2204
        %2234 = vst.msk [vmem:[%s215 + $0x58] sm:$0x3f] %vm2223, %v2205
        %2235 = vst.msk [vmem:[%s215 + $0x60] sm:$0xff] %vm277, %v2206
        %2236 = vst.msk [vmem:[%s215 + $0x68] sm:$0x3f] %vm2223, %v2207
        %2237 = vst.msk [vmem:[%s215 + $0x70] sm:$0xff] %vm277, %v2208
        %2238 = vst.msk [vmem:[%s215 + $0x78] sm:$0x3f] %vm2223, %v2209
        %2239 = vst.msk [vmem:[%s215 + $0x80] sm:$0xff] %vm277, %v2210
        %2240 = vst.msk [vmem:[%s215 + $0x88] sm:$0x3f] %vm2223, %v2211
        %2241 = vst.msk [vmem:[%s215 + $0x90] sm:$0xff] %vm277, %v2212
        %2242 = vst.msk [vmem:[%s215 + $0x98] sm:$0x3f] %vm2223, %v2213
        %2243 = vst.msk [vmem:[%s215 + $0xa0] sm:$0xff] %vm277, %v2214
        %2244 = vst.msk [vmem:[%s215 + $0xa8] sm:$0x3f] %vm2223, %v2215
        %2245 = vst.msk [vmem:[%s215 + $0xb0] sm:$0xff] %vm277, %v2216
        %2246 = vst.msk [vmem:[%s215 + $0xb8] sm:$0x3f] %vm2223, %v2217
        %2247 = vst.msk [vmem:[%s215 + $0xc0] sm:$0xff] %vm277, %v2218
        %2248 = vst.msk [vmem:[%s215 + $0xc8] sm:$0x3f] %vm2223, %v2219
        %2249 = vst.msk [vmem:[%s215 + $0xd0] sm:$0xff] %vm277, %v2220
        %2250 = vst.msk [vmem:[%s215 + $0xd8] sm:$0x3f] %vm2223, %v2221
        %s2251 = sand.u32 %s97, 1
        %s2252 = scalar_lea.sflag [#allocation4], %s2251
        %s2253 = sand.u32 %s97, 1
        %s2254 = smul.addr %s2253, 224
        %s2255 = scalar_lea.vmem [#allocation8], %s2254
        // Predicated region
        $region45: #{tpu_custom_call.1} parent=31 // pred_check
          %p2256 = pneg %p107
        $region46: #{tpu_custom_call.1} parent=31 // pred_check_branch
          %2258 = sbr.rel (%p2256) target = $region48
        $region47: #{tpu_custom_call.1} parent=31 // pred_region
          %s2260 = ssub.s32 3584, 3584
          %2261 = vsyncadd %s2252, %s2260
          %s2262 = smul.addr %s21, 28
          %s2263 = smul.addr %s2262, 128
          %s2264 = scalar_lea.hbm %s3, %s2263
          %s2265 = sshll.u32 %s2255, 4
          %s2266 = int_to_ptr.vmem [resolvable:$true] %s2265
          %2271 = dma.vmem_to_hbm [thread:$0]  %s2266, 3584, %s2264, %s2252, 128, 128, 8
        $region48: #{tpu_custom_call.1} parent=31 // pred_fallthru
          _
      $region32: #{tpu_custom_call.1} parent=5 // pred_fallthru
        _
      %p2272 = scmp.le.s32.totalorder 2, %s16
      // Predicated region
      $region49: #{tpu_custom_call.1} parent=5 // pred_check
        %p2273 = pneg %p2272
      $region50: #{tpu_custom_call.1} parent=5 // pred_check_branch
        %2275 = sbr.rel (%p2273) target = $region52
      $region51: #{tpu_custom_call.1} parent=5 // pred_region
        %s2276 = ssub.s32 %s16, 2
        // Predicated region
        $region53: #{tpu_custom_call.1} parent=51 // pred_check
          %p2277 = pneg %p113
        $region54: #{tpu_custom_call.1} parent=51 // pred_check_branch
          %2279 = sbr.rel (%p2277) target = $region56
        $region55: #{tpu_custom_call.1} parent=51 // pred_region
          %s2280 = sand.u32 %s98, 1
          %s2281 = scalar_lea.sflag [#allocation4], %s2280
          %s2282 = sand.u32 %s98, 1
          %s2283 = smul.addr %s2282, 224
          %s2284 = scalar_lea.vmem [#allocation8], %s2283
          %2285 = dma.done %s2281, 3584
        $region56: #{tpu_custom_call.1} parent=51 // pred_fallthru
          _
      $region52: #{tpu_custom_call.1} parent=5 // pred_fallthru
        _
    $region6: #{tpu_custom_call.1} parent=1 // loop_footer
      %s20 = sadd.s32 1, %s16
    $region7: #{tpu_custom_call.1} parent=1 // loop_footer_branch
      %15 = sbr.rel target = $region3
    $region8: #{tpu_custom_call.1} parent=1 // loop_exit
      _
    %2286 = vsyncpa [#allocation3], 1
    %s2287 = scalar_lea.sflag [#allocation3], 1
    %2288 = vsyncpa %s2287, 1
    %2289 = vsyncpa [#allocation6], 1
    %2290 = vsyncpa [#allocation4], 1
    %s2291 = scalar_lea.sflag [#allocation4], 1
    %2292 = vsyncpa %s2291, 1

</llo_original>
